<compile_context>
chip_gen: v6e
topology: v6e:2x2x1
jax: 0.10.0
libtpu: 0.0.40
codegen_flags: <defaults>
</compile_context>

<pallas_src>
import functools

import jax
import jax.numpy as jnp
from jax.experimental import pallas as pl
from jax.experimental.pallas import tpu as pltpu


def part_decoder_kernel(x_ref, w1_ref, b1_ref, w2_ref, b2_ref, w3_ref, b3_ref, o_ref):
    wdt = w1_ref.dtype  # MXU operand dtype (f32 or bf16); accumulation always f32

    # mlp1 + relu  (cast x to the operand dtype in-kernel; elementwise math in f32)
    h1 = jnp.dot(x_ref[...].astype(wdt), w1_ref[...],
                 preferred_element_type=jnp.float32)
    h1 = jnp.maximum(h1 + b1_ref[...], 0.0)

    # mlp2 + relu
    h2 = jnp.dot(h1.astype(wdt), w2_ref[...],
                 preferred_element_type=jnp.float32)
    h2 = jnp.maximum(h2 + b2_ref[...], 0.0)

    # mlp3 (no activation)
    out = jnp.dot(h2.astype(wdt), w3_ref[...],
                  preferred_element_type=jnp.float32) + b3_ref[...]
    o_ref[...] = out.astype(o_ref.dtype)


def _round_up(n, m):
    return ((n + m - 1) // m) * m


def prepare_params(params, weight_dtype=jnp.bfloat16):
    """One-time cast of the matmul weights to the MXU operand dtype.

    Biases stay float32 (bias add / ReLU are done in f32 inside the kernel).
    Call this once at load time; do NOT re-cast per forward call.
    """
    w1, b1, w2, b2, w3, b3 = params
    if weight_dtype is None or weight_dtype == jnp.float32:
        return params
    return (w1.astype(weight_dtype), b1,
            w2.astype(weight_dtype), b2,
            w3.astype(weight_dtype), b3)


@functools.partial(jax.jit, static_argnames=("num_point", "tile_b", "out_dtype"))
def part_decoder_forward(x, params, num_point, *, tile_b=1024, out_dtype=jnp.float32):
    """x: (B, feat_len) f32 -> (B, num_point, 3) in out_dtype (default f32).

    Weights in `params` may already be bf16 (see prepare_params); the kernel
    casts activations to match and accumulates in f32.
    """
    w1, b1, w2, b2, w3, b3 = params
    B, feat_len = x.shape
    h1d = w1.shape[1]
    h2d = w2.shape[1]
    out_dim = w3.shape[1]
    assert out_dim == num_point * 3

    # ---- batch tile selection -------------------------------------------
    MXU_M = 256                                    # MXU M rows on v6e/v7x
    tile = max(8, int(tile_b))
    tile = _round_up(tile, MXU_M) if tile >= MXU_M else _round_up(tile, 8)
    # Don't allocate a tile (much) larger than the batch itself.
    tile = min(tile, _round_up(B, MXU_M))
    # Keep >= 2 grid steps on real batches so v7x's two TensorCores both work.
    if B > 2 * MXU_M:
        tile = min(tile, _round_up(pl.cdiv(B, 2), MXU_M))
    tile = max(8, (tile // 8) * 8)

    grid = (pl.cdiv(B, tile),)                     # partial last block is masked

    # Full-array blocks for weights / biases (constant index_map -> DMA'd once).
    full = lambda arr: pl.BlockSpec(arr.shape, lambda i: (0, 0))

    # ---- advisory cost estimate for the XLA scheduler --------------------
    rows = grid[0] * tile
    flops = 2 * rows * (feat_len * h1d + h1d * h2d + h2d * out_dim)
    bytes_accessed = int(
        B * feat_len * x.dtype.itemsize
        + sum(int(a.size) * a.dtype.itemsize for a in (w1, b1, w2, b2, w3, b3))
        + B * out_dim * jnp.dtype(out_dtype).itemsize)
    cost = pl.CostEstimate(flops=int(flops), transcendentals=0,
                           bytes_accessed=bytes_accessed)

    out2d = pl.pallas_call(
        part_decoder_kernel,
        out_shape=jax.ShapeDtypeStruct((B, out_dim), out_dtype),
        grid_spec=pltpu.PrefetchScalarGridSpec(
            num_scalar_prefetch=0,
            grid=grid,
            in_specs=[
                pl.BlockSpec((tile, feat_len), lambda i: (i, 0)),  # x
                full(w1), full(b1),
                full(w2), full(b2),
                full(w3), full(b3),
            ],
            out_specs=pl.BlockSpec((tile, out_dim), lambda i: (i, 0)),
        ),
        compiler_params=pltpu.CompilerParams(
            dimension_semantics=("parallel",),
            vmem_limit_bytes=32 * 1024 * 1024),
        cost_estimate=cost,
    )(x, w1, b1, w2, b2, w3, b3)

    return out2d.reshape(-1, num_point, 3)


def init_params(key, feat_len, num_point):
    """Deterministic init mimicking PyTorch nn.Linear default (U[-1/sqrt(fan_in), +])."""
    dims = [(feat_len, feat_len * 4),
            (feat_len * 4, feat_len * 16),
            (feat_len * 16, num_point * 3)]
    params = []
    for (fan_in, fan_out) in dims:
        key, kw, kb = jax.random.split(key, 3)
        bound = 1.0 / jnp.sqrt(fan_in)
        w = jax.random.uniform(kw, (fan_in, fan_out), jnp.float32, -bound, bound)
        b = jax.random.uniform(kb, (1, fan_out), jnp.float32, -bound, bound)
        params += [w, b]
    return tuple(params)


def reference_forward(x, params, num_point):
    w1, b1, w2, b2, w3, b3 = params
    h = jnp.maximum(x @ w1 + b1, 0.0)
    h = jnp.maximum(h @ w2 + b2, 0.0)
    return (h @ w3 + b3).reshape(-1, num_point, 3)


if __name__ == "__main__":
    feat_len = 32
    num_point = 128          # num_point * 3 = 384 (lane-dense multiple of 128)
    batch = 200              # NOT a multiple of the tile -> exercises masked edge block

    key = jax.random.PRNGKey(0)
    key, kx = jax.random.split(key)
    x = jax.random.normal(kx, (batch, feat_len), jnp.float32)
    params_f32 = init_params(key, feat_len, num_point)

    ref = reference_forward(x, params_f32, num_point)

    # f32 MXU-operand path (tight tolerance).  tile rounds to 256 > B: single
    # masked grid step, no wrapper-side padding or output slice.
    out_f32 = part_decoder_forward(x, params_f32, num_point)
    out_f32 = jax.block_until_ready(out_f32)
    assert out_f32.shape == (batch, num_point, 3)
    assert jnp.allclose(out_f32, ref, atol=1e-4, rtol=1e-4)

    # bf16 MXU-operand path: weights converted ONCE (hoisted out of the forward).
    params_bf16 = prepare_params(params_f32, jnp.bfloat16)
    out_bf16 = part_decoder_forward(x, params_bf16, num_point)
    out_bf16 = jax.block_until_ready(out_bf16)
    assert out_bf16.shape == (batch, num_point, 3)
    assert jnp.allclose(out_bf16, ref, atol=2e-2, rtol=2e-2)

    # Optional bf16 output path (halves output HBM traffic on v5e/v6e).
    out_bf16_out = part_decoder_forward(x, params_bf16, num_point, out_dtype=jnp.bfloat16)
    out_bf16_out = jax.block_until_ready(out_bf16_out)
    assert out_bf16_out.shape == (batch, num_point, 3)
    assert jnp.allclose(out_bf16_out.astype(jnp.float32), ref, atol=4e-2, rtol=4e-2)

    print("KERNEL_OK")
</pallas_src>

<mosaic_0001>
module attributes {stable_mosaic.version = 11 : i64} {
  func.func @part_decoder_kernel(%arg0: i32, %arg1: memref<256x32xf32, #tpu.memory_space<vmem>>, %arg2: memref<32x128xf32, #tpu.memory_space<vmem>>, %arg3: memref<1x128xf32, #tpu.memory_space<vmem>>, %arg4: memref<128x512xf32, #tpu.memory_space<vmem>>, %arg5: memref<1x512xf32, #tpu.memory_space<vmem>>, %arg6: memref<512x384xf32, #tpu.memory_space<vmem>>, %arg7: memref<1x384xf32, #tpu.memory_space<vmem>>, %arg8: memref<256x384xf32, #tpu.memory_space<vmem>>) attributes {dimension_semantics = [#tpu.dimension_semantics<parallel>], iteration_bounds = array<i64: 1>, scalar_prefetch = 0 : i64, scratch_operands = 0 : i64, tpu.core_type = #tpu.core_type<tc>, window_params = [{transform_indices = @transform_0, window_bounds = array<i64: 256, 32>}, {pipeline_mode = #tpu.pipeline_mode<synchronous>, transform_indices = @transform_1, window_bounds = array<i64: 32, 128>}, {pipeline_mode = #tpu.pipeline_mode<synchronous>, transform_indices = @transform_2, window_bounds = array<i64: 1, 128>}, {pipeline_mode = #tpu.pipeline_mode<synchronous>, transform_indices = @transform_3, window_bounds = array<i64: 128, 512>}, {pipeline_mode = #tpu.pipeline_mode<synchronous>, transform_indices = @transform_4, window_bounds = array<i64: 1, 512>}, {pipeline_mode = #tpu.pipeline_mode<synchronous>, transform_indices = @transform_5, window_bounds = array<i64: 512, 384>}, {pipeline_mode = #tpu.pipeline_mode<synchronous>, transform_indices = @transform_6, window_bounds = array<i64: 1, 384>}, {transform_indices = @transform_7, window_bounds = array<i64: 256, 384>}]} {
    %c0 = arith.constant 0 : index
    %c0_0 = arith.constant 0 : index
    %0 = vector.load %arg1[%c0, %c0_0] : memref<256x32xf32, #tpu.memory_space<vmem>>, vector<256x32xf32>
    %c0_1 = arith.constant 0 : index
    %c0_2 = arith.constant 0 : index
    %1 = vector.load %arg2[%c0_1, %c0_2] : memref<32x128xf32, #tpu.memory_space<vmem>>, vector<32x128xf32>
    %cst = arith.constant dense<0.000000e+00> : vector<256x128xf32>
    %2 = tpu.matmul %0, %1, %cst {dimension_numbers = #tpu.dot_dimension_numbers<[1], [0], [0], [1], [0, 0, 1, 1], [], []>} : vector<256x32xf32>, vector<32x128xf32>, vector<256x128xf32> -> vector<256x128xf32>
    %c0_3 = arith.constant 0 : index
    %c0_4 = arith.constant 0 : index
    %3 = vector.load %arg3[%c0_3, %c0_4] : memref<1x128xf32, #tpu.memory_space<vmem>>, vector<1x128xf32>
    %4 = vector.broadcast %3 : vector<1x128xf32> to vector<256x128xf32>
    %5 = arith.addf %2, %4 : vector<256x128xf32>
    %cst_5 = arith.constant 0.000000e+00 : f32
    %6 = vector.broadcast %cst_5 : f32 to vector<256x128xf32>
    %7 = arith.maximumf %5, %6 : vector<256x128xf32>
    %c0_6 = arith.constant 0 : index
    %c0_7 = arith.constant 0 : index
    %8 = vector.load %arg4[%c0_6, %c0_7] : memref<128x512xf32, #tpu.memory_space<vmem>>, vector<128x512xf32>
    %cst_8 = arith.constant dense<0.000000e+00> : vector<256x512xf32>
    %9 = tpu.matmul %7, %8, %cst_8 {dimension_numbers = #tpu.dot_dimension_numbers<[1], [0], [0], [1], [0, 0, 1, 1], [], []>} : vector<256x128xf32>, vector<128x512xf32>, vector<256x512xf32> -> vector<256x512xf32>
    %c0_9 = arith.constant 0 : index
    %c0_10 = arith.constant 0 : index
    %10 = vector.load %arg5[%c0_9, %c0_10] : memref<1x512xf32, #tpu.memory_space<vmem>>, vector<1x512xf32>
    %11 = vector.broadcast %10 : vector<1x512xf32> to vector<256x512xf32>
    %12 = arith.addf %9, %11 : vector<256x512xf32>
    %cst_11 = arith.constant 0.000000e+00 : f32
    %13 = vector.broadcast %cst_11 : f32 to vector<256x512xf32>
    %14 = arith.maximumf %12, %13 : vector<256x512xf32>
    %c0_12 = arith.constant 0 : index
    %c0_13 = arith.constant 0 : index
    %15 = vector.load %arg6[%c0_12, %c0_13] : memref<512x384xf32, #tpu.memory_space<vmem>>, vector<512x384xf32>
    %cst_14 = arith.constant dense<0.000000e+00> : vector<256x384xf32>
    %16 = tpu.matmul %14, %15, %cst_14 {dimension_numbers = #tpu.dot_dimension_numbers<[1], [0], [0], [1], [0, 0, 1, 1], [], []>} : vector<256x512xf32>, vector<512x384xf32>, vector<256x384xf32> -> vector<256x384xf32>
    %c0_15 = arith.constant 0 : index
    %c0_16 = arith.constant 0 : index
    %17 = vector.load %arg7[%c0_15, %c0_16] : memref<1x384xf32, #tpu.memory_space<vmem>>, vector<1x384xf32>
    %18 = vector.broadcast %17 : vector<1x384xf32> to vector<256x384xf32>
    %19 = arith.addf %16, %18 : vector<256x384xf32>
    %c0_17 = arith.constant 0 : index
    %c0_18 = arith.constant 0 : index
    %20 = vector.load %arg8[%c0_17, %c0_18] : memref<256x384xf32, #tpu.memory_space<vmem>>, vector<256x384xf32>
    tpu.vector_store %arg8[%c0_17, %c0_18], %19 {strides = array<i32>} : memref<256x384xf32, #tpu.memory_space<vmem>>, vector<256x384xf32>,
    return
  }
  func.func @transform_0(%arg0: i32) -> (i32, i32) {
    %c0_i32 = arith.constant 0 : i32
    %c0_i32_0 = arith.constant 0 : i32
    return %arg0, %c0_i32 : i32, i32
  }
  func.func @transform_1(%arg0: i32) -> (i32, i32) {
    %c0_i32 = arith.constant 0 : i32
    %c0_i32_0 = arith.constant 0 : i32
    %c0_i32_1 = arith.constant 0 : i32
    return %c0_i32, %c0_i32_0 : i32, i32
  }
  func.func @transform_2(%arg0: i32) -> (i32, i32) {
    %c0_i32 = arith.constant 0 : i32
    %c0_i32_0 = arith.constant 0 : i32
    %c0_i32_1 = arith.constant 0 : i32
    return %c0_i32, %c0_i32_0 : i32, i32
  }
  func.func @transform_3(%arg0: i32) -> (i32, i32) {
    %c0_i32 = arith.constant 0 : i32
    %c0_i32_0 = arith.constant 0 : i32
    %c0_i32_1 = arith.constant 0 : i32
    return %c0_i32, %c0_i32_0 : i32, i32
  }
  func.func @transform_4(%arg0: i32) -> (i32, i32) {
    %c0_i32 = arith.constant 0 : i32
    %c0_i32_0 = arith.constant 0 : i32
    %c0_i32_1 = arith.constant 0 : i32
    return %c0_i32, %c0_i32_0 : i32, i32
  }
  func.func @transform_5(%arg0: i32) -> (i32, i32) {
    %c0_i32 = arith.constant 0 : i32
    %c0_i32_0 = arith.constant 0 : i32
    %c0_i32_1 = arith.constant 0 : i32
    return %c0_i32, %c0_i32_0 : i32, i32
  }
  func.func @transform_6(%arg0: i32) -> (i32, i32) {
    %c0_i32 = arith.constant 0 : i32
    %c0_i32_0 = arith.constant 0 : i32
    %c0_i32_1 = arith.constant 0 : i32
    return %c0_i32, %c0_i32_0 : i32, i32
  }
  func.func @transform_7(%arg0: i32) -> (i32, i32) {
    %c0_i32 = arith.constant 0 : i32
    %c0_i32_0 = arith.constant 0 : i32
    return %arg0, %c0_i32 : i32, i32
  }
}

</mosaic_0001>

<llo_original>
// kernel: part_decoder_forward.1
$region0: #{part_decoder_forward.1}
  #allocation0 [shape = 'u32[]', space=smem, size = 0x4, offset = 0x4, fixed_abs, tag = 'smem constant byte address 0x4 - core index']
  #allocation1 [shape = 'u32[144,128]{1,0:T(1,128)}', space=vmem, size = 0x12000, scoped, tag = 'internal scratch']
  %s0 = inlined_call_operand.vmem [shape: f32[200,32], index: 0, kind: input, shape index: {}]
  %s1 = inlined_call_operand.vmem [shape: f32[32,128], index: 1, kind: input, shape index: {}]
  %s2 = inlined_call_operand.vmem [shape: f32[1,128], index: 2, kind: input, shape index: {}]
  %s3 = inlined_call_operand.hbm [shape: f32[128,512], index: 3, kind: input, shape index: {}]
  %s4 = inlined_call_operand.vmem [shape: f32[1,512], index: 4, kind: input, shape index: {}]
  %s5 = inlined_call_operand.hbm [shape: f32[512,384], index: 5, kind: input, shape index: {}]
  %s6 = inlined_call_operand.vmem [shape: f32[1,384], index: 6, kind: input, shape index: {}]
  %s7 = inlined_call_operand.vmem [shape: f32[200,384], index: 7, kind: output, shape index: {}]
  %s8 = sld [smem:[#allocation0]]
  $region65: #{part_decoder_forward.1} parent=0
    _
  %s10 = ssub.s32 1, %s8
  %s11 = scalar_select 0, %s10, %s8
  $region1: #{part_decoder_forward.1} parent=0
    #allocation2 [shape = 'u8[262144]{0}', space=vmem, size = 0x40000, scoped, tag = 'input window, operand 3, single buffered']
    #allocation3 [shape = 's32[1]{0}', space=sflag, size = 0x4, scoped, tag = 'scoped memory for part_decoder_forward.1']
    #allocation4 [shape = 'u8[786432]{0}', space=vmem, size = 0xc0000, scoped, tag = 'input window, operand 5, single buffered']
    #allocation5 [shape = 's32[1]{0}', space=sflag, size = 0x4, scoped, tag = 'scoped memory for part_decoder_forward.1']
    #allocation6 [shape = 'u8[393216]{0}', space=vmem, size = 0x60000, scoped, tag = 'output window, operand 0, single buffered']
    %12 = vsyncpa [#allocation3], 0
    %13 = vsyncpa [#allocation5], 0
    // Predicated region
    $region2: #{part_decoder_forward.1} parent=1 // pred_check
      _
    $region3: #{part_decoder_forward.1} parent=1 // pred_check_branch
      %15 = sbr.rel (0) target = $region5
    $region4: #{part_decoder_forward.1} parent=1 // pred_region
      _
    $region5: #{part_decoder_forward.1} parent=1 // pred_fallthru
      _
    // Predicated region
    $region6: #{part_decoder_forward.1} parent=1 // pred_check
      _
    $region7: #{part_decoder_forward.1} parent=1 // pred_check_branch
      %17 = sbr.rel (0) target = $region9
    $region8: #{part_decoder_forward.1} parent=1 // pred_region
      _
    $region9: #{part_decoder_forward.1} parent=1 // pred_fallthru
      _
    // Predicated region
    $region10: #{part_decoder_forward.1} parent=1 // pred_check
      _
    $region11: #{part_decoder_forward.1} parent=1 // pred_check_branch
      %19 = sbr.rel (0) target = $region13
    $region12: #{part_decoder_forward.1} parent=1 // pred_region
      _
    $region13: #{part_decoder_forward.1} parent=1 // pred_fallthru
      _
    // Predicated region
    $region14: #{part_decoder_forward.1} parent=1 // pred_check
      _
    $region15: #{part_decoder_forward.1} parent=1 // pred_check_branch
      %21 = sbr.rel (0) target = $region17
    $region16: #{part_decoder_forward.1} parent=1 // pred_region
      %s23 = ssub.s32 8192, 8192
      %24 = vsyncadd [#allocation3], %s23
      %s25 = sshll.u32 [#allocation2], 4
      %s26 = int_to_ptr.vmem [resolvable:$true] %s25
      %31 = dma.hbm_to_vmem [thread:$0]  %s3, 8192, %s26, [#allocation3], 512, 512, 32
    $region17: #{part_decoder_forward.1} parent=1 // pred_fallthru
      _
    // Predicated region
    $region18: #{part_decoder_forward.1} parent=1 // pred_check
      _
    $region19: #{part_decoder_forward.1} parent=1 // pred_check_branch
      %33 = sbr.rel (0) target = $region21
    $region20: #{part_decoder_forward.1} parent=1 // pred_region
      _
    $region21: #{part_decoder_forward.1} parent=1 // pred_fallthru
      _
    // Predicated region
    $region22: #{part_decoder_forward.1} parent=1 // pred_check
      _
    $region23: #{part_decoder_forward.1} parent=1 // pred_check_branch
      %35 = sbr.rel (0) target = $region25
    $region24: #{part_decoder_forward.1} parent=1 // pred_region
      %s37 = ssub.s32 24576, 24576
      %38 = vsyncadd [#allocation5], %s37
      %s39 = sshll.u32 [#allocation4], 4
      %s40 = int_to_ptr.vmem [resolvable:$true] %s39
      %45 = dma.hbm_to_vmem [thread:$0]  %s5, 24576, %s40, [#allocation5], 384, 384, 24
    $region25: #{part_decoder_forward.1} parent=1 // pred_fallthru
      _
    // Predicated region
    $region26: #{part_decoder_forward.1} parent=1 // pred_check
      _
    $region27: #{part_decoder_forward.1} parent=1 // pred_check_branch
      %47 = sbr.rel (0) target = $region29
    $region28: #{part_decoder_forward.1} parent=1 // pred_region
      _
    $region29: #{part_decoder_forward.1} parent=1 // pred_fallthru
      _
    // Predicated region
    $region30: #{part_decoder_forward.1} parent=1 // pred_check
      _
    $region31: #{part_decoder_forward.1} parent=1 // pred_check_branch
      %49 = sbr.rel (0) target = $region33
    $region32: #{part_decoder_forward.1} parent=1 // pred_region
      %50 = dma.done [#allocation3], 8192
    $region33: #{part_decoder_forward.1} parent=1 // pred_fallthru
      _
    // Predicated region
    $region34: #{part_decoder_forward.1} parent=1 // pred_check
      _
    $region35: #{part_decoder_forward.1} parent=1 // pred_check_branch
      %52 = sbr.rel (0) target = $region37
    $region36: #{part_decoder_forward.1} parent=1 // pred_region
      %53 = dma.done [#allocation5], 24576
    $region37: #{part_decoder_forward.1} parent=1 // pred_fallthru
      _
    %v54 = vld [vmem:[%s0] sm:$0xff]
    %v55 = vld [vmem:[%s0 + $0x8] sm:$0xff]
    %v56 = vld [vmem:[%s0 + $0x10] sm:$0xff]
    %v57 = vld [vmem:[%s0 + $0x18] sm:$0xff]
    %v58 = vld [vmem:[%s0 + $0x20] sm:$0xff]
    %v59 = vld [vmem:[%s0 + $0x28] sm:$0xff]
    %v60 = vld [vmem:[%s0 + $0x30] sm:$0xff]
    %v61 = vld [vmem:[%s0 + $0x38] sm:$0xff]
    %v62 = vld [vmem:[%s0 + $0x40] sm:$0xff]
    %v63 = vld [vmem:[%s0 + $0x48] sm:$0xff]
    %v64 = vld [vmem:[%s0 + $0x50] sm:$0xff]
    %v65 = vld [vmem:[%s0 + $0x58] sm:$0xff]
    %v66 = vld [vmem:[%s0 + $0x60] sm:$0xff]
    %v67 = vld [vmem:[%s0 + $0x68] sm:$0xff]
    %v68 = vld [vmem:[%s0 + $0x70] sm:$0xff]
    %v69 = vld [vmem:[%s0 + $0x78] sm:$0xff]
    %v70 = vld [vmem:[%s0 + $0x80] sm:$0xff]
    %v71 = vld [vmem:[%s0 + $0x88] sm:$0xff]
    %v72 = vld [vmem:[%s0 + $0x90] sm:$0xff]
    %v73 = vld [vmem:[%s0 + $0x98] sm:$0xff]
    %v74 = vld [vmem:[%s0 + $0xa0] sm:$0xff]
    %v75 = vld [vmem:[%s0 + $0xa8] sm:$0xff]
    %v76 = vld [vmem:[%s0 + $0xb0] sm:$0xff]
    %v77 = vld [vmem:[%s0 + $0xb8] sm:$0xff]
    %v78 = vld [vmem:[%s0 + $0xc0] sm:$0xff]
    %v79 = vld [vmem:[%s0 + $0xc8] sm:$0xff]
    %v80 = vld [vmem:[%s0 + $0xd0] sm:$0xff]
    %v81 = vld [vmem:[%s0 + $0xd8] sm:$0xff]
    %v82 = vld [vmem:[%s0 + $0xe0] sm:$0xff]
    %v83 = vld [vmem:[%s0 + $0xe8] sm:$0xff]
    %v84 = vld [vmem:[%s0 + $0xf0] sm:$0xff]
    %v85 = vld [vmem:[%s0 + $0xf8] sm:$0xff]
    %v86 = vld [vmem:[%s1] sm:$0xff]
    %v87 = vld [vmem:[%s1 + $0x8] sm:$0xff]
    %v88 = vld [vmem:[%s1 + $0x10] sm:$0xff]
    %v89 = vld [vmem:[%s1 + $0x18] sm:$0xff]
    %v90 = vld [vmem:[%s2] sm:$0x1]
    %v92 = vlaneseq
    %v93 = vshrl.u32 %v92, 7
    %v94 = vsub.s32 0, %v93
    %v95 = vrot.slane %v90, %v94
    %vm97 = vcmask 261120
    %v99 = vsel %vm97, %v54, 0
    %v102 = vsel %vm97, %v55, 0
    %v105 = vsel %vm97, %v56, 0
    %v108 = vsel %vm97, %v57, 0
    %v111 = vsel %vm97, %v58, 0
    %v114 = vsel %vm97, %v59, 0
    %v117 = vsel %vm97, %v60, 0
    %v120 = vsel %vm97, %v61, 0
    %v123 = vsel %vm97, %v62, 0
    %v126 = vsel %vm97, %v63, 0
    %v129 = vsel %vm97, %v64, 0
    %v132 = vsel %vm97, %v65, 0
    %v135 = vsel %vm97, %v66, 0
    %v138 = vsel %vm97, %v67, 0
    %v141 = vsel %vm97, %v68, 0
    %v144 = vsel %vm97, %v69, 0
    %v147 = vsel %vm97, %v70, 0
    %v150 = vsel %vm97, %v71, 0
    %v153 = vsel %vm97, %v72, 0
    %v156 = vsel %vm97, %v73, 0
    %v159 = vsel %vm97, %v74, 0
    %v162 = vsel %vm97, %v75, 0
    %v165 = vsel %vm97, %v76, 0
    %v168 = vsel %vm97, %v77, 0
    %v171 = vsel %vm97, %v78, 0
    %v174 = vsel %vm97, %v79, 0
    %v177 = vsel %vm97, %v80, 0
    %v180 = vsel %vm97, %v81, 0
    %v183 = vsel %vm97, %v82, 0
    %v186 = vsel %vm97, %v83, 0
    %v189 = vsel %vm97, %v84, 0
    %v192 = vsel %vm97, %v85, 0
    %194 = vmatprep.subr.mxu0 0.0
    %195 = vmatpush1.msra.mxu0 0.0
    %196 = vmatprep.subr.mxu0 0.0
    %197 = vmatpush1.msra.mxu0 0.0
    %198 = vmatprep.subr.mxu0 0.0
    %199 = vmatpush1.msra.mxu0 0.0
    %200 = vmatprep.subr.mxu0 0.0
    %201 = vmatpush1.msra.mxu0 0.0
    %202 = vmatprep.subr.mxu0 0.0
    %203 = vmatpush1.msra.mxu0 0.0
    %204 = vmatprep.subr.mxu0 0.0
    %205 = vmatpush1.msra.mxu0 0.0
    %206 = vmatprep.subr.mxu0 0.0
    %207 = vmatpush1.msra.mxu0 0.0
    %208 = vmatprep.subr.mxu0 0.0
    %209 = vmatpush1.msra.mxu0 0.0
    %210 = vmatprep.subr.mxu0 0.0
    %211 = vmatpush1.msra.mxu0 0.0
    %212 = vmatprep.subr.mxu0 0.0
    %213 = vmatpush1.msra.mxu0 0.0
    %214 = vmatprep.subr.mxu0 0.0
    %215 = vmatpush1.msra.mxu0 0.0
    %216 = vmatprep.subr.mxu0 0.0
    %217 = vmatpush1.msra.mxu0 0.0
    %218 = vmatprep.subr.mxu0 0.0
    %219 = vmatpush1.msra.mxu0 %v89
    %220 = vmatprep.subr.mxu0 0.0
    %221 = vmatpush1.msra.mxu0 %v88
    %222 = vmatprep.subr.mxu0 0.0
    %223 = vmatpush1.msra.mxu0 %v87
    %224 = vmatprep.subr.mxu0 0.0
    %225 = vmatpush1.msra.mxu0 %v86
    %226 = vmatprep.subr.mxu0 0.0
    %227 = vmatpush2.msra.mxu0 0.0
    %228 = vmatprep.subr.mxu0 0.0
    %229 = vmatpush2.msra.mxu0 0.0
    %230 = vmatprep.subr.mxu0 0.0
    %231 = vmatpush2.msra.mxu0 0.0
    %232 = vmatprep.subr.mxu0 0.0
    %233 = vmatpush2.msra.mxu0 0.0
    %234 = vmatprep.subr.mxu0 0.0
    %235 = vmatpush2.msra.mxu0 0.0
    %236 = vmatprep.subr.mxu0 0.0
    %237 = vmatpush2.msra.mxu0 0.0
    %238 = vmatprep.subr.mxu0 0.0
    %239 = vmatpush2.msra.mxu0 0.0
    %240 = vmatprep.subr.mxu0 0.0
    %241 = vmatpush2.msra.mxu0 0.0
    %242 = vmatprep.subr.mxu0 0.0
    %243 = vmatpush2.msra.mxu0 0.0
    %244 = vmatprep.subr.mxu0 0.0
    %245 = vmatpush2.msra.mxu0 0.0
    %246 = vmatprep.subr.mxu0 0.0
    %247 = vmatpush2.msra.mxu0 0.0
    %248 = vmatprep.subr.mxu0 0.0
    %249 = vmatpush2.msra.mxu0 0.0
    %250 = vmatprep.subr.mxu0 0.0
    %251 = vmatpush2.msra.mxu0 0.0
    %252 = vmatprep.subr.mxu0 0.0
    %253 = vmatpush2.msra.mxu0 0.0
    %254 = vmatprep.subr.mxu0 0.0
    %255 = vmatpush2.msra.mxu0 0.0
    %256 = vmatprep.subr.mxu0 0.0
    %257 = vmatpush2.msra.mxu0 0.0
    %258 = vmatprep.mubr.f32.mxu0 0.0
    %259 = vmatmul.mubr.f32.gmra.mxu0 %v99
    %v260 = vpop.f32.mrf.mxu0
    %v261 = vadd.f32 %v95, %v260
    %v262 = vpop.f32.mrf.mxu0
    %263 = vmatprep.mubr.f32.mxu0 0.0
    %264 = vmatmul.mubr.f32.gmra.mxu0 %v102
    %v265 = vpop.f32.mrf.mxu0
    %v266 = vadd.f32 %v95, %v265
    %v267 = vpop.f32.mrf.mxu0
    %268 = vmatprep.mubr.f32.mxu0 0.0
    %269 = vmatmul.mubr.f32.gmra.mxu0 %v105
    %v270 = vpop.f32.mrf.mxu0
    %v271 = vadd.f32 %v95, %v270
    %v272 = vpop.f32.mrf.mxu0
    %273 = vmatprep.mubr.f32.mxu0 0.0
    %274 = vmatmul.mubr.f32.gmra.mxu0 %v108
    %v275 = vpop.f32.mrf.mxu0
    %v276 = vadd.f32 %v95, %v275
    %v277 = vpop.f32.mrf.mxu0
    %278 = vmatprep.mubr.f32.mxu0 0.0
    %279 = vmatmul.mubr.f32.gmra.mxu0 %v111
    %v280 = vpop.f32.mrf.mxu0
    %v281 = vadd.f32 %v95, %v280
    %v282 = vpop.f32.mrf.mxu0
    %283 = vmatprep.mubr.f32.mxu0 0.0
    %284 = vmatmul.mubr.f32.gmra.mxu0 %v114
    %v285 = vpop.f32.mrf.mxu0
    %v286 = vadd.f32 %v95, %v285
    %v287 = vpop.f32.mrf.mxu0
    %288 = vmatprep.mubr.f32.mxu0 0.0
    %289 = vmatmul.mubr.f32.gmra.mxu0 %v117
    %v290 = vpop.f32.mrf.mxu0
    %v291 = vadd.f32 %v95, %v290
    %v292 = vpop.f32.mrf.mxu0
    %293 = vmatprep.mubr.f32.mxu0 0.0
    %294 = vmatmul.mubr.f32.gmra.mxu0 %v120
    %v295 = vpop.f32.mrf.mxu0
    %v296 = vadd.f32 %v95, %v295
    %v297 = vpop.f32.mrf.mxu0
    %298 = vmatprep.mubr.f32.mxu0 0.0
    %299 = vmatmul.mubr.f32.gmra.mxu0 %v123
    %v300 = vpop.f32.mrf.mxu0
    %v301 = vadd.f32 %v95, %v300
    %v302 = vpop.f32.mrf.mxu0
    %303 = vmatprep.mubr.f32.mxu0 0.0
    %304 = vmatmul.mubr.f32.gmra.mxu0 %v126
    %v305 = vpop.f32.mrf.mxu0
    %v306 = vadd.f32 %v95, %v305
    %v307 = vpop.f32.mrf.mxu0
    %308 = vmatprep.mubr.f32.mxu0 0.0
    %309 = vmatmul.mubr.f32.gmra.mxu0 %v129
    %v310 = vpop.f32.mrf.mxu0
    %v311 = vadd.f32 %v95, %v310
    %v312 = vpop.f32.mrf.mxu0
    %313 = vmatprep.mubr.f32.mxu0 0.0
    %314 = vmatmul.mubr.f32.gmra.mxu0 %v132
    %v315 = vpop.f32.mrf.mxu0
    %v316 = vadd.f32 %v95, %v315
    %v317 = vpop.f32.mrf.mxu0
    %318 = vmatprep.mubr.f32.mxu0 0.0
    %319 = vmatmul.mubr.f32.gmra.mxu0 %v135
    %v320 = vpop.f32.mrf.mxu0
    %v321 = vadd.f32 %v95, %v320
    %v322 = vpop.f32.mrf.mxu0
    %323 = vmatprep.mubr.f32.mxu0 0.0
    %324 = vmatmul.mubr.f32.gmra.mxu0 %v138
    %v325 = vpop.f32.mrf.mxu0
    %v326 = vadd.f32 %v95, %v325
    %v327 = vpop.f32.mrf.mxu0
    %328 = vmatprep.mubr.f32.mxu0 0.0
    %329 = vmatmul.mubr.f32.gmra.mxu0 %v141
    %v330 = vpop.f32.mrf.mxu0
    %v331 = vadd.f32 %v95, %v330
    %v332 = vpop.f32.mrf.mxu0
    %333 = vmatprep.mubr.f32.mxu0 0.0
    %334 = vmatmul.mubr.f32.gmra.mxu0 %v144
    %v335 = vpop.f32.mrf.mxu0
    %v336 = vadd.f32 %v95, %v335
    %v337 = vpop.f32.mrf.mxu0
    %338 = vmatprep.mubr.f32.mxu0 0.0
    %339 = vmatmul.mubr.f32.gmra.mxu0 %v147
    %v340 = vpop.f32.mrf.mxu0
    %v341 = vadd.f32 %v95, %v340
    %v342 = vpop.f32.mrf.mxu0
    %343 = vmatprep.mubr.f32.mxu0 0.0
    %344 = vmatmul.mubr.f32.gmra.mxu0 %v150
    %v345 = vpop.f32.mrf.mxu0
    %v346 = vadd.f32 %v95, %v345
    %v347 = vpop.f32.mrf.mxu0
    %348 = vmatprep.mubr.f32.mxu0 0.0
    %349 = vmatmul.mubr.f32.gmra.mxu0 %v153
    %v350 = vpop.f32.mrf.mxu0
    %v351 = vadd.f32 %v95, %v350
    %v352 = vpop.f32.mrf.mxu0
    %353 = vmatprep.mubr.f32.mxu0 0.0
    %354 = vmatmul.mubr.f32.gmra.mxu0 %v156
    %v355 = vpop.f32.mrf.mxu0
    %v356 = vadd.f32 %v95, %v355
    %v357 = vpop.f32.mrf.mxu0
    %358 = vmatprep.mubr.f32.mxu0 0.0
    %359 = vmatmul.mubr.f32.gmra.mxu0 %v159
    %v360 = vpop.f32.mrf.mxu0
    %v361 = vadd.f32 %v95, %v360
    %v362 = vpop.f32.mrf.mxu0
    %363 = vmatprep.mubr.f32.mxu0 0.0
    %364 = vmatmul.mubr.f32.gmra.mxu0 %v162
    %v365 = vpop.f32.mrf.mxu0
    %v366 = vadd.f32 %v95, %v365
    %v367 = vpop.f32.mrf.mxu0
    %368 = vmatprep.mubr.f32.mxu0 0.0
    %369 = vmatmul.mubr.f32.gmra.mxu0 %v165
    %v370 = vpop.f32.mrf.mxu0
    %v371 = vadd.f32 %v95, %v370
    %v372 = vpop.f32.mrf.mxu0
    %373 = vmatprep.mubr.f32.mxu0 0.0
    %374 = vmatmul.mubr.f32.gmra.mxu0 %v168
    %v375 = vpop.f32.mrf.mxu0
    %v376 = vadd.f32 %v95, %v375
    %v377 = vpop.f32.mrf.mxu0
    %378 = vmatprep.mubr.f32.mxu0 0.0
    %379 = vmatmul.mubr.f32.gmra.mxu0 %v171
    %v380 = vpop.f32.mrf.mxu0
    %v381 = vadd.f32 %v95, %v380
    %v382 = vpop.f32.mrf.mxu0
    %383 = vmatprep.mubr.f32.mxu0 0.0
    %384 = vmatmul.mubr.f32.gmra.mxu0 %v174
    %v385 = vpop.f32.mrf.mxu0
    %v386 = vadd.f32 %v95, %v385
    %v387 = vpop.f32.mrf.mxu0
    %388 = vmatprep.mubr.f32.mxu0 0.0
    %389 = vmatmul.mubr.f32.gmra.mxu0 %v177
    %v390 = vpop.f32.mrf.mxu0
    %v391 = vadd.f32 %v95, %v390
    %v392 = vpop.f32.mrf.mxu0
    %393 = vmatprep.mubr.f32.mxu0 0.0
    %394 = vmatmul.mubr.f32.gmra.mxu0 %v180
    %v395 = vpop.f32.mrf.mxu0
    %v396 = vadd.f32 %v95, %v395
    %v397 = vpop.f32.mrf.mxu0
    %398 = vmatprep.mubr.f32.mxu0 0.0
    %399 = vmatmul.mubr.f32.gmra.mxu0 %v183
    %v400 = vpop.f32.mrf.mxu0
    %v401 = vadd.f32 %v95, %v400
    %v402 = vpop.f32.mrf.mxu0
    %403 = vmatprep.mubr.f32.mxu0 0.0
    %404 = vmatmul.mubr.f32.gmra.mxu0 %v186
    %v405 = vpop.f32.mrf.mxu0
    %v406 = vadd.f32 %v95, %v405
    %v407 = vpop.f32.mrf.mxu0
    %408 = vmatprep.mubr.f32.mxu0 0.0
    %409 = vmatmul.mubr.f32.gmra.mxu0 %v189
    %v410 = vpop.f32.mrf.mxu0
    %v411 = vadd.f32 %v95, %v410
    %v412 = vpop.f32.mrf.mxu0
    %413 = vmatprep.mubr.f32.mxu0 0.0
    %414 = vmatmul.mubr.f32.gmra.mxu0 %v192
    %v415 = vpop.f32.mrf.mxu0
    %v416 = vadd.f32 %v95, %v415
    %v417 = vpop.f32.mrf.mxu0
    %418 = vdwg.mxu0
    %v419 = vmax.f32 %v261, 0.0
    %v420 = vmax.f32 %v266, 0.0
    %v421 = vmax.f32 %v271, 0.0
    %v422 = vmax.f32 %v276, 0.0
    %v423 = vmax.f32 %v281, 0.0
    %v424 = vmax.f32 %v286, 0.0
    %v425 = vmax.f32 %v291, 0.0
    %v426 = vmax.f32 %v296, 0.0
    %v427 = vmax.f32 %v301, 0.0
    %v428 = vmax.f32 %v306, 0.0
    %v429 = vmax.f32 %v311, 0.0
    %v430 = vmax.f32 %v316, 0.0
    %v431 = vmax.f32 %v321, 0.0
    %v432 = vmax.f32 %v326, 0.0
    %v433 = vmax.f32 %v331, 0.0
    %v434 = vmax.f32 %v336, 0.0
    %v435 = vmax.f32 %v341, 0.0
    %v436 = vmax.f32 %v346, 0.0
    %v437 = vmax.f32 %v351, 0.0
    %v438 = vmax.f32 %v356, 0.0
    %v439 = vmax.f32 %v361, 0.0
    %v440 = vmax.f32 %v366, 0.0
    %v441 = vmax.f32 %v371, 0.0
    %v442 = vmax.f32 %v376, 0.0
    %v443 = vmax.f32 %v381, 0.0
    %v444 = vmax.f32 %v386, 0.0
    %v445 = vmax.f32 %v391, 0.0
    %v446 = vmax.f32 %v396, 0.0
    %v447 = vmax.f32 %v401, 0.0
    %v448 = vmax.f32 %v406, 0.0
    %v449 = vmax.f32 %v411, 0.0
    %v450 = vmax.f32 %v416, 0.0
    %v451 = vld [vmem:[#allocation2] sm:$0xff]
    %v452 = vld [vmem:[#allocation2 + $0x8] sm:$0xff]
    %v453 = vld [vmem:[#allocation2 + $0x10] sm:$0xff]
    %v454 = vld [vmem:[#allocation2 + $0x18] sm:$0xff]
    %v455 = vld [vmem:[#allocation2 + $0x20] sm:$0xff]
    %v456 = vld [vmem:[#allocation2 + $0x28] sm:$0xff]
    %v457 = vld [vmem:[#allocation2 + $0x30] sm:$0xff]
    %v458 = vld [vmem:[#allocation2 + $0x38] sm:$0xff]
    %v459 = vld [vmem:[#allocation2 + $0x40] sm:$0xff]
    %v460 = vld [vmem:[#allocation2 + $0x48] sm:$0xff]
    %v461 = vld [vmem:[#allocation2 + $0x50] sm:$0xff]
    %v462 = vld [vmem:[#allocation2 + $0x58] sm:$0xff]
    %v463 = vld [vmem:[#allocation2 + $0x60] sm:$0xff]
    %v464 = vld [vmem:[#allocation2 + $0x68] sm:$0xff]
    %v465 = vld [vmem:[#allocation2 + $0x70] sm:$0xff]
    %v466 = vld [vmem:[#allocation2 + $0x78] sm:$0xff]
    %v467 = vld [vmem:[#allocation2 + $0x80] sm:$0xff]
    %v468 = vld [vmem:[#allocation2 + $0x88] sm:$0xff]
    %v469 = vld [vmem:[#allocation2 + $0x90] sm:$0xff]
    %v470 = vld [vmem:[#allocation2 + $0x98] sm:$0xff]
    %v471 = vld [vmem:[#allocation2 + $0xa0] sm:$0xff]
    %v472 = vld [vmem:[#allocation2 + $0xa8] sm:$0xff]
    %v473 = vld [vmem:[#allocation2 + $0xb0] sm:$0xff]
    %v474 = vld [vmem:[#allocation2 + $0xb8] sm:$0xff]
    %v475 = vld [vmem:[#allocation2 + $0xc0] sm:$0xff]
    %v476 = vld [vmem:[#allocation2 + $0xc8] sm:$0xff]
    %v477 = vld [vmem:[#allocation2 + $0xd0] sm:$0xff]
    %v478 = vld [vmem:[#allocation2 + $0xd8] sm:$0xff]
    %v479 = vld [vmem:[#allocation2 + $0xe0] sm:$0xff]
    %v480 = vld [vmem:[#allocation2 + $0xe8] sm:$0xff]
    %v481 = vld [vmem:[#allocation2 + $0xf0] sm:$0xff]
    %v482 = vld [vmem:[#allocation2 + $0xf8] sm:$0xff]
    %v483 = vld [vmem:[#allocation2 + $0x100] sm:$0xff]
    %v484 = vld [vmem:[#allocation2 + $0x108] sm:$0xff]
    %v485 = vld [vmem:[#allocation2 + $0x110] sm:$0xff]
    %v486 = vld [vmem:[#allocation2 + $0x118] sm:$0xff]
    %v487 = vld [vmem:[#allocation2 + $0x120] sm:$0xff]
    %v488 = vld [vmem:[#allocation2 + $0x128] sm:$0xff]
    %v489 = vld [vmem:[#allocation2 + $0x130] sm:$0xff]
    %v490 = vld [vmem:[#allocation2 + $0x138] sm:$0xff]
    %v491 = vld [vmem:[#allocation2 + $0x140] sm:$0xff]
    %v492 = vld [vmem:[#allocation2 + $0x148] sm:$0xff]
    %v493 = vld [vmem:[#allocation2 + $0x150] sm:$0xff]
    %v494 = vld [vmem:[#allocation2 + $0x158] sm:$0xff]
    %v495 = vld [vmem:[#allocation2 + $0x160] sm:$0xff]
    %v496 = vld [vmem:[#allocation2 + $0x168] sm:$0xff]
    %v497 = vld [vmem:[#allocation2 + $0x170] sm:$0xff]
    %v498 = vld [vmem:[#allocation2 + $0x178] sm:$0xff]
    %v499 = vld [vmem:[#allocation2 + $0x180] sm:$0xff]
    %v500 = vld [vmem:[#allocation2 + $0x188] sm:$0xff]
    %v501 = vld [vmem:[#allocation2 + $0x190] sm:$0xff]
    %v502 = vld [vmem:[#allocation2 + $0x198] sm:$0xff]
    %v503 = vld [vmem:[#allocation2 + $0x1a0] sm:$0xff]
    %v504 = vld [vmem:[#allocation2 + $0x1a8] sm:$0xff]
    %v505 = vld [vmem:[#allocation2 + $0x1b0] sm:$0xff]
    %v506 = vld [vmem:[#allocation2 + $0x1b8] sm:$0xff]
    %v507 = vld [vmem:[#allocation2 + $0x1c0] sm:$0xff]
    %v508 = vld [vmem:[#allocation2 + $0x1c8] sm:$0xff]
    %v509 = vld [vmem:[#allocation2 + $0x1d0] sm:$0xff]
    %v510 = vld [vmem:[#allocation2 + $0x1d8] sm:$0xff]
    %v511 = vld [vmem:[#allocation2 + $0x1e0] sm:$0xff]
    %v512 = vld [vmem:[#allocation2 + $0x1e8] sm:$0xff]
    %v513 = vld [vmem:[#allocation2 + $0x1f0] sm:$0xff]
    %v514 = vld [vmem:[#allocation2 + $0x1f8] sm:$0xff]
    %v515 = vld [vmem:[%s4] sm:$0xf]
    %v517 = vlaneseq
    %v518 = vshrl.u32 %v517, 7
    %v519 = vsub.s32 0, %v518
    %v520 = vrot.slane %v515, %v519
    %v521 = vlaneseq
    %v522 = vshrl.u32 %v521, 7
    %v523 = vsub.s32 1, %v522
    %v524 = vrot.slane %v515, %v523
    %v525 = vlaneseq
    %v526 = vshrl.u32 %v525, 7
    %v527 = vsub.s32 2, %v526
    %v528 = vrot.slane %v515, %v527
    %v529 = vlaneseq
    %v530 = vshrl.u32 %v529, 7
    %v531 = vsub.s32 3, %v530
    %v532 = vrot.slane %v515, %v531
    %537 = vmatprep.subr.mxu0 %v512
    %538 = vmatpush1.msra.mxu0 %v511
    %539 = vmatprep.subr.mxu0 %v508
    %540 = vmatpush1.msra.mxu0 %v507
    %541 = vmatprep.subr.mxu0 %v504
    %542 = vmatpush1.msra.mxu0 %v503
    %543 = vmatprep.subr.mxu0 %v500
    %544 = vmatpush1.msra.mxu0 %v499
    %545 = vmatprep.subr.mxu0 %v496
    %546 = vmatpush1.msra.mxu0 %v495
    %547 = vmatprep.subr.mxu0 %v492
    %548 = vmatpush1.msra.mxu0 %v491
    %549 = vmatprep.subr.mxu0 %v488
    %550 = vmatpush1.msra.mxu0 %v487
    %551 = vmatprep.subr.mxu0 %v484
    %552 = vmatpush1.msra.mxu0 %v483
    %553 = vmatprep.subr.mxu0 %v480
    %554 = vmatpush1.msra.mxu0 %v479
    %555 = vmatprep.subr.mxu0 %v476
    %556 = vmatpush1.msra.mxu0 %v475
    %557 = vmatprep.subr.mxu0 %v472
    %558 = vmatpush1.msra.mxu0 %v471
    %559 = vmatprep.subr.mxu0 %v468
    %560 = vmatpush1.msra.mxu0 %v467
    %561 = vmatprep.subr.mxu0 %v464
    %562 = vmatpush1.msra.mxu0 %v463
    %563 = vmatprep.subr.mxu0 %v460
    %564 = vmatpush1.msra.mxu0 %v459
    %565 = vmatprep.subr.mxu0 %v456
    %566 = vmatpush1.msra.mxu0 %v455
    %567 = vmatprep.subr.mxu0 %v452
    %568 = vmatpush1.msra.mxu0 %v451
    %569 = vmatprep.subr.mxu0 0.0
    %570 = vmatpush2.msra.mxu0 0.0
    %571 = vmatprep.subr.mxu0 0.0
    %572 = vmatpush2.msra.mxu0 0.0
    %573 = vmatprep.subr.mxu0 0.0
    %574 = vmatpush2.msra.mxu0 0.0
    %575 = vmatprep.subr.mxu0 0.0
    %576 = vmatpush2.msra.mxu0 0.0
    %577 = vmatprep.subr.mxu0 0.0
    %578 = vmatpush2.msra.mxu0 0.0
    %579 = vmatprep.subr.mxu0 0.0
    %580 = vmatpush2.msra.mxu0 0.0
    %581 = vmatprep.subr.mxu0 0.0
    %582 = vmatpush2.msra.mxu0 0.0
    %583 = vmatprep.subr.mxu0 0.0
    %584 = vmatpush2.msra.mxu0 0.0
    %585 = vmatprep.subr.mxu0 0.0
    %586 = vmatpush2.msra.mxu0 0.0
    %587 = vmatprep.subr.mxu0 0.0
    %588 = vmatpush2.msra.mxu0 0.0
    %589 = vmatprep.subr.mxu0 0.0
    %590 = vmatpush2.msra.mxu0 0.0
    %591 = vmatprep.subr.mxu0 0.0
    %592 = vmatpush2.msra.mxu0 0.0
    %593 = vmatprep.subr.mxu0 0.0
    %594 = vmatpush2.msra.mxu0 0.0
    %595 = vmatprep.subr.mxu0 0.0
    %596 = vmatpush2.msra.mxu0 0.0
    %597 = vmatprep.subr.mxu0 0.0
    %598 = vmatpush2.msra.mxu0 0.0
    %599 = vmatprep.subr.mxu0 0.0
    %600 = vmatpush2.msra.mxu0 0.0
    %601 = vmatprep.mubr.f32.mxu0 0.0
    %602 = vmatmul.mubr.f32.gmra.mxu0 %v419
    %v603 = vpop.f32.mrf.mxu0
    %v604 = vadd.f32 %v520, %v603
    %v605 = vpop.f32.mrf.mxu0
    %v606 = vadd.f32 %v524, %v605
    %607 = vmatprep.mubr.f32.mxu0 0.0
    %608 = vmatmul.mubr.f32.gmra.mxu0 %v420
    %v609 = vpop.f32.mrf.mxu0
    %v610 = vadd.f32 %v520, %v609
    %v611 = vpop.f32.mrf.mxu0
    %v612 = vadd.f32 %v524, %v611
    %613 = vmatprep.mubr.f32.mxu0 0.0
    %614 = vmatmul.mubr.f32.gmra.mxu0 %v421
    %v615 = vpop.f32.mrf.mxu0
    %v616 = vadd.f32 %v520, %v615
    %v617 = vpop.f32.mrf.mxu0
    %v618 = vadd.f32 %v524, %v617
    %619 = vmatprep.mubr.f32.mxu0 0.0
    %620 = vmatmul.mubr.f32.gmra.mxu0 %v422
    %v621 = vpop.f32.mrf.mxu0
    %v622 = vadd.f32 %v520, %v621
    %v623 = vpop.f32.mrf.mxu0
    %v624 = vadd.f32 %v524, %v623
    %625 = vmatprep.mubr.f32.mxu0 0.0
    %626 = vmatmul.mubr.f32.gmra.mxu0 %v423
    %v627 = vpop.f32.mrf.mxu0
    %v628 = vadd.f32 %v520, %v627
    %v629 = vpop.f32.mrf.mxu0
    %v630 = vadd.f32 %v524, %v629
    %631 = vmatprep.mubr.f32.mxu0 0.0
    %632 = vmatmul.mubr.f32.gmra.mxu0 %v424
    %v633 = vpop.f32.mrf.mxu0
    %v634 = vadd.f32 %v520, %v633
    %v635 = vpop.f32.mrf.mxu0
    %v636 = vadd.f32 %v524, %v635
    %637 = vmatprep.mubr.f32.mxu0 0.0
    %638 = vmatmul.mubr.f32.gmra.mxu0 %v425
    %v639 = vpop.f32.mrf.mxu0
    %v640 = vadd.f32 %v520, %v639
    %v641 = vpop.f32.mrf.mxu0
    %v642 = vadd.f32 %v524, %v641
    %643 = vmatprep.mubr.f32.mxu0 0.0
    %644 = vmatmul.mubr.f32.gmra.mxu0 %v426
    %v645 = vpop.f32.mrf.mxu0
    %v646 = vadd.f32 %v520, %v645
    %v647 = vpop.f32.mrf.mxu0
    %v648 = vadd.f32 %v524, %v647
    %649 = vmatprep.mubr.f32.mxu0 0.0
    %650 = vmatmul.mubr.f32.gmra.mxu0 %v427
    %v651 = vpop.f32.mrf.mxu0
    %v652 = vadd.f32 %v520, %v651
    %v653 = vpop.f32.mrf.mxu0
    %v654 = vadd.f32 %v524, %v653
    %655 = vmatprep.mubr.f32.mxu0 0.0
    %656 = vmatmul.mubr.f32.gmra.mxu0 %v428
    %v657 = vpop.f32.mrf.mxu0
    %v658 = vadd.f32 %v520, %v657
    %v659 = vpop.f32.mrf.mxu0
    %v660 = vadd.f32 %v524, %v659
    %661 = vmatprep.mubr.f32.mxu0 0.0
    %662 = vmatmul.mubr.f32.gmra.mxu0 %v429
    %v663 = vpop.f32.mrf.mxu0
    %v664 = vadd.f32 %v520, %v663
    %v665 = vpop.f32.mrf.mxu0
    %v666 = vadd.f32 %v524, %v665
    %667 = vmatprep.mubr.f32.mxu0 0.0
    %668 = vmatmul.mubr.f32.gmra.mxu0 %v430
    %v669 = vpop.f32.mrf.mxu0
    %v670 = vadd.f32 %v520, %v669
    %v671 = vpop.f32.mrf.mxu0
    %v672 = vadd.f32 %v524, %v671
    %673 = vmatprep.mubr.f32.mxu0 0.0
    %674 = vmatmul.mubr.f32.gmra.mxu0 %v431
    %v675 = vpop.f32.mrf.mxu0
    %v676 = vadd.f32 %v520, %v675
    %v677 = vpop.f32.mrf.mxu0
    %v678 = vadd.f32 %v524, %v677
    %679 = vmatprep.mubr.f32.mxu0 0.0
    %680 = vmatmul.mubr.f32.gmra.mxu0 %v432
    %v681 = vpop.f32.mrf.mxu0
    %v682 = vadd.f32 %v520, %v681
    %v683 = vpop.f32.mrf.mxu0
    %v684 = vadd.f32 %v524, %v683
    %685 = vmatprep.mubr.f32.mxu0 0.0
    %686 = vmatmul.mubr.f32.gmra.mxu0 %v433
    %v687 = vpop.f32.mrf.mxu0
    %v688 = vadd.f32 %v520, %v687
    %v689 = vpop.f32.mrf.mxu0
    %v690 = vadd.f32 %v524, %v689
    %691 = vmatprep.mubr.f32.mxu0 0.0
    %692 = vmatmul.mubr.f32.gmra.mxu0 %v434
    %v693 = vpop.f32.mrf.mxu0
    %v694 = vadd.f32 %v520, %v693
    %v695 = vpop.f32.mrf.mxu0
    %v696 = vadd.f32 %v524, %v695
    %697 = vmatprep.mubr.f32.mxu0 0.0
    %698 = vmatmul.mubr.f32.gmra.mxu0 %v435
    %v699 = vpop.f32.mrf.mxu0
    %v700 = vadd.f32 %v520, %v699
    %v701 = vpop.f32.mrf.mxu0
    %v702 = vadd.f32 %v524, %v701
    %703 = vmatprep.mubr.f32.mxu0 0.0
    %704 = vmatmul.mubr.f32.gmra.mxu0 %v436
    %v705 = vpop.f32.mrf.mxu0
    %v706 = vadd.f32 %v520, %v705
    %v707 = vpop.f32.mrf.mxu0
    %v708 = vadd.f32 %v524, %v707
    %709 = vmatprep.mubr.f32.mxu0 0.0
    %710 = vmatmul.mubr.f32.gmra.mxu0 %v437
    %v711 = vpop.f32.mrf.mxu0
    %v712 = vadd.f32 %v520, %v711
    %v713 = vpop.f32.mrf.mxu0
    %v714 = vadd.f32 %v524, %v713
    %715 = vmatprep.mubr.f32.mxu0 0.0
    %716 = vmatmul.mubr.f32.gmra.mxu0 %v438
    %v717 = vpop.f32.mrf.mxu0
    %v718 = vadd.f32 %v520, %v717
    %v719 = vpop.f32.mrf.mxu0
    %v720 = vadd.f32 %v524, %v719
    %721 = vmatprep.mubr.f32.mxu0 0.0
    %722 = vmatmul.mubr.f32.gmra.mxu0 %v439
    %v723 = vpop.f32.mrf.mxu0
    %v724 = vadd.f32 %v520, %v723
    %v725 = vpop.f32.mrf.mxu0
    %v726 = vadd.f32 %v524, %v725
    %727 = vmatprep.mubr.f32.mxu0 0.0
    %728 = vmatmul.mubr.f32.gmra.mxu0 %v440
    %v729 = vpop.f32.mrf.mxu0
    %v730 = vadd.f32 %v520, %v729
    %v731 = vpop.f32.mrf.mxu0
    %v732 = vadd.f32 %v524, %v731
    %733 = vmatprep.mubr.f32.mxu0 0.0
    %734 = vmatmul.mubr.f32.gmra.mxu0 %v441
    %v735 = vpop.f32.mrf.mxu0
    %v736 = vadd.f32 %v520, %v735
    %v737 = vpop.f32.mrf.mxu0
    %v738 = vadd.f32 %v524, %v737
    %739 = vmatprep.mubr.f32.mxu0 0.0
    %740 = vmatmul.mubr.f32.gmra.mxu0 %v442
    %v741 = vpop.f32.mrf.mxu0
    %v742 = vadd.f32 %v520, %v741
    %v743 = vpop.f32.mrf.mxu0
    %v744 = vadd.f32 %v524, %v743
    %745 = vmatprep.mubr.f32.mxu0 0.0
    %746 = vmatmul.mubr.f32.gmra.mxu0 %v443
    %v747 = vpop.f32.mrf.mxu0
    %v748 = vadd.f32 %v520, %v747
    %v749 = vpop.f32.mrf.mxu0
    %v750 = vadd.f32 %v524, %v749
    %751 = vmatprep.mubr.f32.mxu0 0.0
    %752 = vmatmul.mubr.f32.gmra.mxu0 %v444
    %v753 = vpop.f32.mrf.mxu0
    %v754 = vadd.f32 %v520, %v753
    %v755 = vpop.f32.mrf.mxu0
    %v756 = vadd.f32 %v524, %v755
    %757 = vmatprep.mubr.f32.mxu0 0.0
    %758 = vmatmul.mubr.f32.gmra.mxu0 %v445
    %v759 = vpop.f32.mrf.mxu0
    %v760 = vadd.f32 %v520, %v759
    %v761 = vpop.f32.mrf.mxu0
    %v762 = vadd.f32 %v524, %v761
    %763 = vmatprep.mubr.f32.mxu0 0.0
    %764 = vmatmul.mubr.f32.gmra.mxu0 %v446
    %v765 = vpop.f32.mrf.mxu0
    %v766 = vadd.f32 %v520, %v765
    %v767 = vpop.f32.mrf.mxu0
    %v768 = vadd.f32 %v524, %v767
    %769 = vmatprep.mubr.f32.mxu0 0.0
    %770 = vmatmul.mubr.f32.gmra.mxu0 %v447
    %v771 = vpop.f32.mrf.mxu0
    %v772 = vadd.f32 %v520, %v771
    %v773 = vpop.f32.mrf.mxu0
    %v774 = vadd.f32 %v524, %v773
    %775 = vmatprep.mubr.f32.mxu0 0.0
    %776 = vmatmul.mubr.f32.gmra.mxu0 %v448
    %v777 = vpop.f32.mrf.mxu0
    %v778 = vadd.f32 %v520, %v777
    %v779 = vpop.f32.mrf.mxu0
    %v780 = vadd.f32 %v524, %v779
    %781 = vmatprep.mubr.f32.mxu0 0.0
    %782 = vmatmul.mubr.f32.gmra.mxu0 %v449
    %v783 = vpop.f32.mrf.mxu0
    %v784 = vadd.f32 %v520, %v783
    %v785 = vpop.f32.mrf.mxu0
    %v786 = vadd.f32 %v524, %v785
    %787 = vmatprep.mubr.f32.mxu0 0.0
    %788 = vmatmul.mubr.f32.gmra.mxu0 %v450
    %v789 = vpop.f32.mrf.mxu0
    %v790 = vadd.f32 %v520, %v789
    %v791 = vpop.f32.mrf.mxu0
    %v792 = vadd.f32 %v524, %v791
    %793 = vdwg.mxu0
    %794 = vmatprep.subr.mxu0 %v514
    %795 = vmatpush1.msra.mxu0 %v513
    %796 = vmatprep.subr.mxu0 %v510
    %797 = vmatpush1.msra.mxu0 %v509
    %798 = vmatprep.subr.mxu0 %v506
    %799 = vmatpush1.msra.mxu0 %v505
    %800 = vmatprep.subr.mxu0 %v502
    %801 = vmatpush1.msra.mxu0 %v501
    %802 = vmatprep.subr.mxu0 %v498
    %803 = vmatpush1.msra.mxu0 %v497
    %804 = vmatprep.subr.mxu0 %v494
    %805 = vmatpush1.msra.mxu0 %v493
    %806 = vmatprep.subr.mxu0 %v490
    %807 = vmatpush1.msra.mxu0 %v489
    %808 = vmatprep.subr.mxu0 %v486
    %809 = vmatpush1.msra.mxu0 %v485
    %810 = vmatprep.subr.mxu0 %v482
    %811 = vmatpush1.msra.mxu0 %v481
    %812 = vmatprep.subr.mxu0 %v478
    %813 = vmatpush1.msra.mxu0 %v477
    %814 = vmatprep.subr.mxu0 %v474
    %815 = vmatpush1.msra.mxu0 %v473
    %816 = vmatprep.subr.mxu0 %v470
    %817 = vmatpush1.msra.mxu0 %v469
    %818 = vmatprep.subr.mxu0 %v466
    %819 = vmatpush1.msra.mxu0 %v465
    %820 = vmatprep.subr.mxu0 %v462
    %821 = vmatpush1.msra.mxu0 %v461
    %822 = vmatprep.subr.mxu0 %v458
    %823 = vmatpush1.msra.mxu0 %v457
    %824 = vmatprep.subr.mxu0 %v454
    %825 = vmatpush1.msra.mxu0 %v453
    %826 = vmatprep.subr.mxu0 0.0
    %827 = vmatpush2.msra.mxu0 0.0
    %828 = vmatprep.subr.mxu0 0.0
    %829 = vmatpush2.msra.mxu0 0.0
    %830 = vmatprep.subr.mxu0 0.0
    %831 = vmatpush2.msra.mxu0 0.0
    %832 = vmatprep.subr.mxu0 0.0
    %833 = vmatpush2.msra.mxu0 0.0
    %834 = vmatprep.subr.mxu0 0.0
    %835 = vmatpush2.msra.mxu0 0.0
    %836 = vmatprep.subr.mxu0 0.0
    %837 = vmatpush2.msra.mxu0 0.0
    %838 = vmatprep.subr.mxu0 0.0
    %839 = vmatpush2.msra.mxu0 0.0
    %840 = vmatprep.subr.mxu0 0.0
    %841 = vmatpush2.msra.mxu0 0.0
    %842 = vmatprep.subr.mxu0 0.0
    %843 = vmatpush2.msra.mxu0 0.0
    %844 = vmatprep.subr.mxu0 0.0
    %845 = vmatpush2.msra.mxu0 0.0
    %846 = vmatprep.subr.mxu0 0.0
    %847 = vmatpush2.msra.mxu0 0.0
    %848 = vmatprep.subr.mxu0 0.0
    %849 = vmatpush2.msra.mxu0 0.0
    %850 = vmatprep.subr.mxu0 0.0
    %851 = vmatpush2.msra.mxu0 0.0
    %852 = vmatprep.subr.mxu0 0.0
    %853 = vmatpush2.msra.mxu0 0.0
    %854 = vmatprep.subr.mxu0 0.0
    %855 = vmatpush2.msra.mxu0 0.0
    %856 = vmatprep.subr.mxu0 0.0
    %857 = vmatpush2.msra.mxu0 0.0
    %858 = vmatprep.mubr.f32.mxu0 0.0
    %859 = vmatmul.mubr.f32.gmra.mxu0 %v419
    %v860 = vpop.f32.mrf.mxu0
    %v861 = vadd.f32 %v528, %v860
    %v862 = vpop.f32.mrf.mxu0
    %v863 = vadd.f32 %v532, %v862
    %864 = vmatprep.mubr.f32.mxu0 0.0
    %865 = vmatmul.mubr.f32.gmra.mxu0 %v420
    %v866 = vpop.f32.mrf.mxu0
    %v867 = vadd.f32 %v528, %v866
    %v868 = vpop.f32.mrf.mxu0
    %v869 = vadd.f32 %v532, %v868
    %870 = vmatprep.mubr.f32.mxu0 0.0
    %871 = vmatmul.mubr.f32.gmra.mxu0 %v421
    %v872 = vpop.f32.mrf.mxu0
    %v873 = vadd.f32 %v528, %v872
    %v874 = vpop.f32.mrf.mxu0
    %v875 = vadd.f32 %v532, %v874
    %876 = vmatprep.mubr.f32.mxu0 0.0
    %877 = vmatmul.mubr.f32.gmra.mxu0 %v422
    %v878 = vpop.f32.mrf.mxu0
    %v879 = vadd.f32 %v528, %v878
    %v880 = vpop.f32.mrf.mxu0
    %v881 = vadd.f32 %v532, %v880
    %882 = vmatprep.mubr.f32.mxu0 0.0
    %883 = vmatmul.mubr.f32.gmra.mxu0 %v423
    %v884 = vpop.f32.mrf.mxu0
    %v885 = vadd.f32 %v528, %v884
    %v886 = vpop.f32.mrf.mxu0
    %v887 = vadd.f32 %v532, %v886
    %888 = vmatprep.mubr.f32.mxu0 0.0
    %889 = vmatmul.mubr.f32.gmra.mxu0 %v424
    %v890 = vpop.f32.mrf.mxu0
    %v891 = vadd.f32 %v528, %v890
    %v892 = vpop.f32.mrf.mxu0
    %v893 = vadd.f32 %v532, %v892
    %894 = vmatprep.mubr.f32.mxu0 0.0
    %895 = vmatmul.mubr.f32.gmra.mxu0 %v425
    %v896 = vpop.f32.mrf.mxu0
    %v897 = vadd.f32 %v528, %v896
    %v898 = vpop.f32.mrf.mxu0
    %v899 = vadd.f32 %v532, %v898
    %900 = vmatprep.mubr.f32.mxu0 0.0
    %901 = vmatmul.mubr.f32.gmra.mxu0 %v426
    %v902 = vpop.f32.mrf.mxu0
    %v903 = vadd.f32 %v528, %v902
    %v904 = vpop.f32.mrf.mxu0
    %v905 = vadd.f32 %v532, %v904
    %906 = vmatprep.mubr.f32.mxu0 0.0
    %907 = vmatmul.mubr.f32.gmra.mxu0 %v427
    %v908 = vpop.f32.mrf.mxu0
    %v909 = vadd.f32 %v528, %v908
    %v910 = vpop.f32.mrf.mxu0
    %v911 = vadd.f32 %v532, %v910
    %912 = vmatprep.mubr.f32.mxu0 0.0
    %913 = vmatmul.mubr.f32.gmra.mxu0 %v428
    %v914 = vpop.f32.mrf.mxu0
    %v915 = vadd.f32 %v528, %v914
    %v916 = vpop.f32.mrf.mxu0
    %v917 = vadd.f32 %v532, %v916
    %918 = vmatprep.mubr.f32.mxu0 0.0
    %919 = vmatmul.mubr.f32.gmra.mxu0 %v429
    %v920 = vpop.f32.mrf.mxu0
    %v921 = vadd.f32 %v528, %v920
    %v922 = vpop.f32.mrf.mxu0
    %v923 = vadd.f32 %v532, %v922
    %924 = vmatprep.mubr.f32.mxu0 0.0
    %925 = vmatmul.mubr.f32.gmra.mxu0 %v430
    %v926 = vpop.f32.mrf.mxu0
    %v927 = vadd.f32 %v528, %v926
    %v928 = vpop.f32.mrf.mxu0
    %v929 = vadd.f32 %v532, %v928
    %930 = vmatprep.mubr.f32.mxu0 0.0
    %931 = vmatmul.mubr.f32.gmra.mxu0 %v431
    %v932 = vpop.f32.mrf.mxu0
    %v933 = vadd.f32 %v528, %v932
    %v934 = vpop.f32.mrf.mxu0
    %v935 = vadd.f32 %v532, %v934
    %936 = vmatprep.mubr.f32.mxu0 0.0
    %937 = vmatmul.mubr.f32.gmra.mxu0 %v432
    %v938 = vpop.f32.mrf.mxu0
    %v939 = vadd.f32 %v528, %v938
    %v940 = vpop.f32.mrf.mxu0
    %v941 = vadd.f32 %v532, %v940
    %942 = vmatprep.mubr.f32.mxu0 0.0
    %943 = vmatmul.mubr.f32.gmra.mxu0 %v433
    %v944 = vpop.f32.mrf.mxu0
    %v945 = vadd.f32 %v528, %v944
    %v946 = vpop.f32.mrf.mxu0
    %v947 = vadd.f32 %v532, %v946
    %948 = vmatprep.mubr.f32.mxu0 0.0
    %949 = vmatmul.mubr.f32.gmra.mxu0 %v434
    %v950 = vpop.f32.mrf.mxu0
    %v951 = vadd.f32 %v528, %v950
    %v952 = vpop.f32.mrf.mxu0
    %v953 = vadd.f32 %v532, %v952
    %954 = vmatprep.mubr.f32.mxu0 0.0
    %955 = vmatmul.mubr.f32.gmra.mxu0 %v435
    %v956 = vpop.f32.mrf.mxu0
    %v957 = vadd.f32 %v528, %v956
    %v958 = vpop.f32.mrf.mxu0
    %v959 = vadd.f32 %v532, %v958
    %960 = vmatprep.mubr.f32.mxu0 0.0
    %961 = vmatmul.mubr.f32.gmra.mxu0 %v436
    %v962 = vpop.f32.mrf.mxu0
    %v963 = vadd.f32 %v528, %v962
    %v964 = vpop.f32.mrf.mxu0
    %v965 = vadd.f32 %v532, %v964
    %966 = vmatprep.mubr.f32.mxu0 0.0
    %967 = vmatmul.mubr.f32.gmra.mxu0 %v437
    %v968 = vpop.f32.mrf.mxu0
    %v969 = vadd.f32 %v528, %v968
    %v970 = vpop.f32.mrf.mxu0
    %v971 = vadd.f32 %v532, %v970
    %972 = vmatprep.mubr.f32.mxu0 0.0
    %973 = vmatmul.mubr.f32.gmra.mxu0 %v438
    %v974 = vpop.f32.mrf.mxu0
    %v975 = vadd.f32 %v528, %v974
    %v976 = vpop.f32.mrf.mxu0
    %v977 = vadd.f32 %v532, %v976
    %978 = vmatprep.mubr.f32.mxu0 0.0
    %979 = vmatmul.mubr.f32.gmra.mxu0 %v439
    %v980 = vpop.f32.mrf.mxu0
    %v981 = vadd.f32 %v528, %v980
    %v982 = vpop.f32.mrf.mxu0
    %v983 = vadd.f32 %v532, %v982
    %984 = vmatprep.mubr.f32.mxu0 0.0
    %985 = vmatmul.mubr.f32.gmra.mxu0 %v440
    %v986 = vpop.f32.mrf.mxu0
    %v987 = vadd.f32 %v528, %v986
    %v988 = vpop.f32.mrf.mxu0
    %v989 = vadd.f32 %v532, %v988
    %990 = vmatprep.mubr.f32.mxu0 0.0
    %991 = vmatmul.mubr.f32.gmra.mxu0 %v441
    %v992 = vpop.f32.mrf.mxu0
    %v993 = vadd.f32 %v528, %v992
    %v994 = vpop.f32.mrf.mxu0
    %v995 = vadd.f32 %v532, %v994
    %996 = vmatprep.mubr.f32.mxu0 0.0
    %997 = vmatmul.mubr.f32.gmra.mxu0 %v442
    %v998 = vpop.f32.mrf.mxu0
    %v999 = vadd.f32 %v528, %v998
    %v1000 = vpop.f32.mrf.mxu0
    %v1001 = vadd.f32 %v532, %v1000
    %1002 = vmatprep.mubr.f32.mxu0 0.0
    %1003 = vmatmul.mubr.f32.gmra.mxu0 %v443
    %v1004 = vpop.f32.mrf.mxu0
    %v1005 = vadd.f32 %v528, %v1004
    %v1006 = vpop.f32.mrf.mxu0
    %v1007 = vadd.f32 %v532, %v1006
    %1008 = vmatprep.mubr.f32.mxu0 0.0
    %1009 = vmatmul.mubr.f32.gmra.mxu0 %v444
    %v1010 = vpop.f32.mrf.mxu0
    %v1011 = vadd.f32 %v528, %v1010
    %v1012 = vpop.f32.mrf.mxu0
    %v1013 = vadd.f32 %v532, %v1012
    %1014 = vmatprep.mubr.f32.mxu0 0.0
    %1015 = vmatmul.mubr.f32.gmra.mxu0 %v445
    %v1016 = vpop.f32.mrf.mxu0
    %v1017 = vadd.f32 %v528, %v1016
    %v1018 = vpop.f32.mrf.mxu0
    %v1019 = vadd.f32 %v532, %v1018
    %1020 = vmatprep.mubr.f32.mxu0 0.0
    %1021 = vmatmul.mubr.f32.gmra.mxu0 %v446
    %v1022 = vpop.f32.mrf.mxu0
    %v1023 = vadd.f32 %v528, %v1022
    %v1024 = vpop.f32.mrf.mxu0
    %v1025 = vadd.f32 %v532, %v1024
    %1026 = vmatprep.mubr.f32.mxu0 0.0
    %1027 = vmatmul.mubr.f32.gmra.mxu0 %v447
    %v1028 = vpop.f32.mrf.mxu0
    %v1029 = vadd.f32 %v528, %v1028
    %v1030 = vpop.f32.mrf.mxu0
    %v1031 = vadd.f32 %v532, %v1030
    %1032 = vmatprep.mubr.f32.mxu0 0.0
    %1033 = vmatmul.mubr.f32.gmra.mxu0 %v448
    %v1034 = vpop.f32.mrf.mxu0
    %v1035 = vadd.f32 %v528, %v1034
    %v1036 = vpop.f32.mrf.mxu0
    %v1037 = vadd.f32 %v532, %v1036
    %1038 = vmatprep.mubr.f32.mxu0 0.0
    %1039 = vmatmul.mubr.f32.gmra.mxu0 %v449
    %v1040 = vpop.f32.mrf.mxu0
    %v1041 = vadd.f32 %v528, %v1040
    %v1042 = vpop.f32.mrf.mxu0
    %v1043 = vadd.f32 %v532, %v1042
    %1044 = vmatprep.mubr.f32.mxu0 0.0
    %1045 = vmatmul.mubr.f32.gmra.mxu0 %v450
    %v1046 = vpop.f32.mrf.mxu0
    %v1047 = vadd.f32 %v528, %v1046
    %v1048 = vpop.f32.mrf.mxu0
    %v1049 = vadd.f32 %v532, %v1048
    %1050 = vdwg.mxu0
    %v1051 = vmax.f32 %v604, 0.0
    %v1052 = vmax.f32 %v606, 0.0
    %v1053 = vmax.f32 %v861, 0.0
    %v1054 = vmax.f32 %v863, 0.0
    %v1055 = vmax.f32 %v610, 0.0
    %v1056 = vmax.f32 %v612, 0.0
    %v1057 = vmax.f32 %v867, 0.0
    %v1058 = vmax.f32 %v869, 0.0
    %v1059 = vmax.f32 %v616, 0.0
    %v1060 = vmax.f32 %v618, 0.0
    %v1061 = vmax.f32 %v873, 0.0
    %v1062 = vmax.f32 %v875, 0.0
    %v1063 = vmax.f32 %v622, 0.0
    %v1064 = vmax.f32 %v624, 0.0
    %v1065 = vmax.f32 %v879, 0.0
    %v1066 = vmax.f32 %v881, 0.0
    %v1067 = vmax.f32 %v628, 0.0
    %v1068 = vmax.f32 %v630, 0.0
    %v1069 = vmax.f32 %v885, 0.0
    %v1070 = vmax.f32 %v887, 0.0
    %v1071 = vmax.f32 %v634, 0.0
    %v1072 = vmax.f32 %v636, 0.0
    %v1073 = vmax.f32 %v891, 0.0
    %v1074 = vmax.f32 %v893, 0.0
    %v1075 = vmax.f32 %v640, 0.0
    %v1076 = vmax.f32 %v642, 0.0
    %v1077 = vmax.f32 %v897, 0.0
    %v1078 = vmax.f32 %v899, 0.0
    %v1079 = vmax.f32 %v646, 0.0
    %v1080 = vmax.f32 %v648, 0.0
    %v1081 = vmax.f32 %v903, 0.0
    %v1082 = vmax.f32 %v905, 0.0
    %v1083 = vmax.f32 %v652, 0.0
    %v1084 = vmax.f32 %v654, 0.0
    %v1085 = vmax.f32 %v909, 0.0
    %v1086 = vmax.f32 %v911, 0.0
    %v1087 = vmax.f32 %v658, 0.0
    %v1088 = vmax.f32 %v660, 0.0
    %v1089 = vmax.f32 %v915, 0.0
    %v1090 = vmax.f32 %v917, 0.0
    %v1091 = vmax.f32 %v664, 0.0
    %v1092 = vmax.f32 %v666, 0.0
    %v1093 = vmax.f32 %v921, 0.0
    %v1094 = vmax.f32 %v923, 0.0
    %v1095 = vmax.f32 %v670, 0.0
    %v1096 = vmax.f32 %v672, 0.0
    %v1097 = vmax.f32 %v927, 0.0
    %v1098 = vmax.f32 %v929, 0.0
    %v1099 = vmax.f32 %v676, 0.0
    %v1100 = vmax.f32 %v678, 0.0
    %v1101 = vmax.f32 %v933, 0.0
    %v1102 = vmax.f32 %v935, 0.0
    %v1103 = vmax.f32 %v682, 0.0
    %v1104 = vmax.f32 %v684, 0.0
    %v1105 = vmax.f32 %v939, 0.0
    %v1106 = vmax.f32 %v941, 0.0
    %v1107 = vmax.f32 %v688, 0.0
    %v1108 = vmax.f32 %v690, 0.0
    %v1109 = vmax.f32 %v945, 0.0
    %v1110 = vmax.f32 %v947, 0.0
    %v1111 = vmax.f32 %v694, 0.0
    %v1112 = vmax.f32 %v696, 0.0
    %v1113 = vmax.f32 %v951, 0.0
    %v1114 = vmax.f32 %v953, 0.0
    %v1115 = vmax.f32 %v700, 0.0
    %v1116 = vmax.f32 %v702, 0.0
    %v1117 = vmax.f32 %v957, 0.0
    %v1118 = vmax.f32 %v959, 0.0
    %v1119 = vmax.f32 %v706, 0.0
    %v1120 = vmax.f32 %v708, 0.0
    %v1121 = vmax.f32 %v963, 0.0
    %v1122 = vmax.f32 %v965, 0.0
    %v1123 = vmax.f32 %v712, 0.0
    %v1124 = vmax.f32 %v714, 0.0
    %v1125 = vmax.f32 %v969, 0.0
    %v1126 = vmax.f32 %v971, 0.0
    %v1127 = vmax.f32 %v718, 0.0
    %v1128 = vmax.f32 %v720, 0.0
    %v1129 = vmax.f32 %v975, 0.0
    %v1130 = vmax.f32 %v977, 0.0
    %v1131 = vmax.f32 %v724, 0.0
    %v1132 = vmax.f32 %v726, 0.0
    %v1133 = vmax.f32 %v981, 0.0
    %v1134 = vmax.f32 %v983, 0.0
    %v1135 = vmax.f32 %v730, 0.0
    %v1136 = vmax.f32 %v732, 0.0
    %v1137 = vmax.f32 %v987, 0.0
    %v1138 = vmax.f32 %v989, 0.0
    %v1139 = vmax.f32 %v736, 0.0
    %v1140 = vmax.f32 %v738, 0.0
    %v1141 = vmax.f32 %v993, 0.0
    %v1142 = vmax.f32 %v995, 0.0
    %v1143 = vmax.f32 %v742, 0.0
    %v1144 = vmax.f32 %v744, 0.0
    %v1145 = vmax.f32 %v999, 0.0
    %v1146 = vmax.f32 %v1001, 0.0
    %v1147 = vmax.f32 %v748, 0.0
    %v1148 = vmax.f32 %v750, 0.0
    %v1149 = vmax.f32 %v1005, 0.0
    %v1150 = vmax.f32 %v1007, 0.0
    %v1151 = vmax.f32 %v754, 0.0
    %v1152 = vmax.f32 %v756, 0.0
    %v1153 = vmax.f32 %v1011, 0.0
    %v1154 = vmax.f32 %v1013, 0.0
    %v1155 = vmax.f32 %v760, 0.0
    %v1156 = vmax.f32 %v762, 0.0
    %v1157 = vmax.f32 %v1017, 0.0
    %v1158 = vmax.f32 %v1019, 0.0
    %v1159 = vmax.f32 %v766, 0.0
    %v1160 = vmax.f32 %v768, 0.0
    %v1161 = vmax.f32 %v1023, 0.0
    %v1162 = vmax.f32 %v1025, 0.0
    %v1163 = vmax.f32 %v772, 0.0
    %v1164 = vmax.f32 %v774, 0.0
    %v1165 = vmax.f32 %v1029, 0.0
    %v1166 = vmax.f32 %v1031, 0.0
    %v1167 = vmax.f32 %v778, 0.0
    %v1168 = vmax.f32 %v780, 0.0
    %v1169 = vmax.f32 %v1035, 0.0
    %v1170 = vmax.f32 %v1037, 0.0
    %v1171 = vmax.f32 %v784, 0.0
    %v1172 = vmax.f32 %v786, 0.0
    %v1173 = vmax.f32 %v1041, 0.0
    %v1174 = vmax.f32 %v1043, 0.0
    %v1175 = vmax.f32 %v790, 0.0
    %v1176 = vmax.f32 %v792, 0.0
    %v1177 = vmax.f32 %v1047, 0.0
    %v1178 = vmax.f32 %v1049, 0.0
    %v1179 = vld [vmem:[#allocation4] sm:$0xff]
    %v1180 = vld [vmem:[#allocation4 + $0x8] sm:$0xff]
    %v1181 = vld [vmem:[#allocation4 + $0x10] sm:$0xff]
    %v1182 = vld [vmem:[#allocation4 + $0x18] sm:$0xff]
    %v1183 = vld [vmem:[#allocation4 + $0x20] sm:$0xff]
    %v1184 = vld [vmem:[#allocation4 + $0x28] sm:$0xff]
    %v1185 = vld [vmem:[#allocation4 + $0x30] sm:$0xff]
    %v1186 = vld [vmem:[#allocation4 + $0x38] sm:$0xff]
    %v1187 = vld [vmem:[#allocation4 + $0x40] sm:$0xff]
    %v1188 = vld [vmem:[#allocation4 + $0x48] sm:$0xff]
    %v1189 = vld [vmem:[#allocation4 + $0x50] sm:$0xff]
    %v1190 = vld [vmem:[#allocation4 + $0x58] sm:$0xff]
    %v1191 = vld [vmem:[#allocation4 + $0x60] sm:$0xff]
    %v1192 = vld [vmem:[#allocation4 + $0x68] sm:$0xff]
    %v1193 = vld [vmem:[#allocation4 + $0x70] sm:$0xff]
    %v1194 = vld [vmem:[#allocation4 + $0x78] sm:$0xff]
    %v1195 = vld [vmem:[#allocation4 + $0x80] sm:$0xff]
    %v1196 = vld [vmem:[#allocation4 + $0x88] sm:$0xff]
    %v1197 = vld [vmem:[#allocation4 + $0x90] sm:$0xff]
    %v1198 = vld [vmem:[#allocation4 + $0x98] sm:$0xff]
    %v1199 = vld [vmem:[#allocation4 + $0xa0] sm:$0xff]
    %v1200 = vld [vmem:[#allocation4 + $0xa8] sm:$0xff]
    %v1201 = vld [vmem:[#allocation4 + $0xb0] sm:$0xff]
    %v1202 = vld [vmem:[#allocation4 + $0xb8] sm:$0xff]
    %v1203 = vld [vmem:[#allocation4 + $0xc0] sm:$0xff]
    %v1204 = vld [vmem:[#allocation4 + $0xc8] sm:$0xff]
    %v1205 = vld [vmem:[#allocation4 + $0xd0] sm:$0xff]
    %v1206 = vld [vmem:[#allocation4 + $0xd8] sm:$0xff]
    %v1207 = vld [vmem:[#allocation4 + $0xe0] sm:$0xff]
    %v1208 = vld [vmem:[#allocation4 + $0xe8] sm:$0xff]
    %v1209 = vld [vmem:[#allocation4 + $0xf0] sm:$0xff]
    %v1210 = vld [vmem:[#allocation4 + $0xf8] sm:$0xff]
    %v1211 = vld [vmem:[#allocation4 + $0x100] sm:$0xff]
    %v1212 = vld [vmem:[#allocation4 + $0x108] sm:$0xff]
    %v1213 = vld [vmem:[#allocation4 + $0x110] sm:$0xff]
    %v1214 = vld [vmem:[#allocation4 + $0x118] sm:$0xff]
    %v1215 = vld [vmem:[#allocation4 + $0x120] sm:$0xff]
    %v1216 = vld [vmem:[#allocation4 + $0x128] sm:$0xff]
    %v1217 = vld [vmem:[#allocation4 + $0x130] sm:$0xff]
    %v1218 = vld [vmem:[#allocation4 + $0x138] sm:$0xff]
    %v1219 = vld [vmem:[#allocation4 + $0x140] sm:$0xff]
    %v1220 = vld [vmem:[#allocation4 + $0x148] sm:$0xff]
    %v1221 = vld [vmem:[#allocation4 + $0x150] sm:$0xff]
    %v1222 = vld [vmem:[#allocation4 + $0x158] sm:$0xff]
    %v1223 = vld [vmem:[#allocation4 + $0x160] sm:$0xff]
    %v1224 = vld [vmem:[#allocation4 + $0x168] sm:$0xff]
    %v1225 = vld [vmem:[#allocation4 + $0x170] sm:$0xff]
    %v1226 = vld [vmem:[#allocation4 + $0x178] sm:$0xff]
    %v1227 = vld [vmem:[#allocation4 + $0x180] sm:$0xff]
    %v1228 = vld [vmem:[#allocation4 + $0x188] sm:$0xff]
    %v1229 = vld [vmem:[#allocation4 + $0x190] sm:$0xff]
    %v1230 = vld [vmem:[#allocation4 + $0x198] sm:$0xff]
    %v1231 = vld [vmem:[#allocation4 + $0x1a0] sm:$0xff]
    %v1232 = vld [vmem:[#allocation4 + $0x1a8] sm:$0xff]
    %v1233 = vld [vmem:[#allocation4 + $0x1b0] sm:$0xff]
    %v1234 = vld [vmem:[#allocation4 + $0x1b8] sm:$0xff]
    %v1235 = vld [vmem:[#allocation4 + $0x1c0] sm:$0xff]
    %v1236 = vld [vmem:[#allocation4 + $0x1c8] sm:$0xff]
    %v1237 = vld [vmem:[#allocation4 + $0x1d0] sm:$0xff]
    %v1238 = vld [vmem:[#allocation4 + $0x1d8] sm:$0xff]
    %v1239 = vld [vmem:[#allocation4 + $0x1e0] sm:$0xff]
    %v1240 = vld [vmem:[#allocation4 + $0x1e8] sm:$0xff]
    %v1241 = vld [vmem:[#allocation4 + $0x1f0] sm:$0xff]
    %v1242 = vld [vmem:[#allocation4 + $0x1f8] sm:$0xff]
    %v1243 = vld [vmem:[#allocation4 + $0x200] sm:$0xff]
    %v1244 = vld [vmem:[#allocation4 + $0x208] sm:$0xff]
    %v1245 = vld [vmem:[#allocation4 + $0x210] sm:$0xff]
    %v1246 = vld [vmem:[#allocation4 + $0x218] sm:$0xff]
    %v1247 = vld [vmem:[#allocation4 + $0x220] sm:$0xff]
    %v1248 = vld [vmem:[#allocation4 + $0x228] sm:$0xff]
    %v1249 = vld [vmem:[#allocation4 + $0x230] sm:$0xff]
    %v1250 = vld [vmem:[#allocation4 + $0x238] sm:$0xff]
    %v1251 = vld [vmem:[#allocation4 + $0x240] sm:$0xff]
    %v1252 = vld [vmem:[#allocation4 + $0x248] sm:$0xff]
    %v1253 = vld [vmem:[#allocation4 + $0x250] sm:$0xff]
    %v1254 = vld [vmem:[#allocation4 + $0x258] sm:$0xff]
    %v1255 = vld [vmem:[#allocation4 + $0x260] sm:$0xff]
    %v1256 = vld [vmem:[#allocation4 + $0x268] sm:$0xff]
    %v1257 = vld [vmem:[#allocation4 + $0x270] sm:$0xff]
    %v1258 = vld [vmem:[#allocation4 + $0x278] sm:$0xff]
    %v1259 = vld [vmem:[#allocation4 + $0x280] sm:$0xff]
    %v1260 = vld [vmem:[#allocation4 + $0x288] sm:$0xff]
    %v1261 = vld [vmem:[#allocation4 + $0x290] sm:$0xff]
    %v1262 = vld [vmem:[#allocation4 + $0x298] sm:$0xff]
    %v1263 = vld [vmem:[#allocation4 + $0x2a0] sm:$0xff]
    %v1264 = vld [vmem:[#allocation4 + $0x2a8] sm:$0xff]
    %v1265 = vld [vmem:[#allocation4 + $0x2b0] sm:$0xff]
    %v1266 = vld [vmem:[#allocation4 + $0x2b8] sm:$0xff]
    %v1267 = vld [vmem:[#allocation4 + $0x2c0] sm:$0xff]
    %v1268 = vld [vmem:[#allocation4 + $0x2c8] sm:$0xff]
    %v1269 = vld [vmem:[#allocation4 + $0x2d0] sm:$0xff]
    %v1270 = vld [vmem:[#allocation4 + $0x2d8] sm:$0xff]
    %v1271 = vld [vmem:[#allocation4 + $0x2e0] sm:$0xff]
    %v1272 = vld [vmem:[#allocation4 + $0x2e8] sm:$0xff]
    %v1273 = vld [vmem:[#allocation4 + $0x2f0] sm:$0xff]
    %v1274 = vld [vmem:[#allocation4 + $0x2f8] sm:$0xff]
    %v1275 = vld [vmem:[#allocation4 + $0x300] sm:$0xff]
    %v1276 = vld [vmem:[#allocation4 + $0x308] sm:$0xff]
    %v1277 = vld [vmem:[#allocation4 + $0x310] sm:$0xff]
    %v1278 = vld [vmem:[#allocation4 + $0x318] sm:$0xff]
    %v1279 = vld [vmem:[#allocation4 + $0x320] sm:$0xff]
    %v1280 = vld [vmem:[#allocation4 + $0x328] sm:$0xff]
    %v1281 = vld [vmem:[#allocation4 + $0x330] sm:$0xff]
    %v1282 = vld [vmem:[#allocation4 + $0x338] sm:$0xff]
    %v1283 = vld [vmem:[#allocation4 + $0x340] sm:$0xff]
    %v1284 = vld [vmem:[#allocation4 + $0x348] sm:$0xff]
    %v1285 = vld [vmem:[#allocation4 + $0x350] sm:$0xff]
    %v1286 = vld [vmem:[#allocation4 + $0x358] sm:$0xff]
    %v1287 = vld [vmem:[#allocation4 + $0x360] sm:$0xff]
    %v1288 = vld [vmem:[#allocation4 + $0x368] sm:$0xff]
    %v1289 = vld [vmem:[#allocation4 + $0x370] sm:$0xff]
    %v1290 = vld [vmem:[#allocation4 + $0x378] sm:$0xff]
    %v1291 = vld [vmem:[#allocation4 + $0x380] sm:$0xff]
    %v1292 = vld [vmem:[#allocation4 + $0x388] sm:$0xff]
    %v1293 = vld [vmem:[#allocation4 + $0x390] sm:$0xff]
    %v1294 = vld [vmem:[#allocation4 + $0x398] sm:$0xff]
    %v1295 = vld [vmem:[#allocation4 + $0x3a0] sm:$0xff]
    %v1296 = vld [vmem:[#allocation4 + $0x3a8] sm:$0xff]
    %v1297 = vld [vmem:[#allocation4 + $0x3b0] sm:$0xff]
    %v1298 = vld [vmem:[#allocation4 + $0x3b8] sm:$0xff]
    %v1299 = vld [vmem:[#allocation4 + $0x3c0] sm:$0xff]
    %v1300 = vld [vmem:[#allocation4 + $0x3c8] sm:$0xff]
    %v1301 = vld [vmem:[#allocation4 + $0x3d0] sm:$0xff]
    %v1302 = vld [vmem:[#allocation4 + $0x3d8] sm:$0xff]
    %v1303 = vld [vmem:[#allocation4 + $0x3e0] sm:$0xff]
    %v1304 = vld [vmem:[#allocation4 + $0x3e8] sm:$0xff]
    %v1305 = vld [vmem:[#allocation4 + $0x3f0] sm:$0xff]
    %v1306 = vld [vmem:[#allocation4 + $0x3f8] sm:$0xff]
    %v1307 = vld [vmem:[#allocation4 + $0x400] sm:$0xff]
    %v1308 = vld [vmem:[#allocation4 + $0x408] sm:$0xff]
    %v1309 = vld [vmem:[#allocation4 + $0x410] sm:$0xff]
    %v1310 = vld [vmem:[#allocation4 + $0x418] sm:$0xff]
    %v1311 = vld [vmem:[#allocation4 + $0x420] sm:$0xff]
    %v1312 = vld [vmem:[#allocation4 + $0x428] sm:$0xff]
    %v1313 = vld [vmem:[#allocation4 + $0x430] sm:$0xff]
    %v1314 = vld [vmem:[#allocation4 + $0x438] sm:$0xff]
    %v1315 = vld [vmem:[#allocation4 + $0x440] sm:$0xff]
    %v1316 = vld [vmem:[#allocation4 + $0x448] sm:$0xff]
    %v1317 = vld [vmem:[#allocation4 + $0x450] sm:$0xff]
    %v1318 = vld [vmem:[#allocation4 + $0x458] sm:$0xff]
    %v1319 = vld [vmem:[#allocation4 + $0x460] sm:$0xff]
    %v1320 = vld [vmem:[#allocation4 + $0x468] sm:$0xff]
    %v1321 = vld [vmem:[#allocation4 + $0x470] sm:$0xff]
    %v1322 = vld [vmem:[#allocation4 + $0x478] sm:$0xff]
    %v1323 = vld [vmem:[#allocation4 + $0x480] sm:$0xff]
    %v1324 = vld [vmem:[#allocation4 + $0x488] sm:$0xff]
    %v1325 = vld [vmem:[#allocation4 + $0x490] sm:$0xff]
    %v1326 = vld [vmem:[#allocation4 + $0x498] sm:$0xff]
    %v1327 = vld [vmem:[#allocation4 + $0x4a0] sm:$0xff]
    %v1328 = vld [vmem:[#allocation4 + $0x4a8] sm:$0xff]
    %v1329 = vld [vmem:[#allocation4 + $0x4b0] sm:$0xff]
    %v1330 = vld [vmem:[#allocation4 + $0x4b8] sm:$0xff]
    %v1331 = vld [vmem:[#allocation4 + $0x4c0] sm:$0xff]
    %v1332 = vld [vmem:[#allocation4 + $0x4c8] sm:$0xff]
    %v1333 = vld [vmem:[#allocation4 + $0x4d0] sm:$0xff]
    %v1334 = vld [vmem:[#allocation4 + $0x4d8] sm:$0xff]
    %v1335 = vld [vmem:[#allocation4 + $0x4e0] sm:$0xff]
    %v1336 = vld [vmem:[#allocation4 + $0x4e8] sm:$0xff]
    %v1337 = vld [vmem:[#allocation4 + $0x4f0] sm:$0xff]
    %v1338 = vld [vmem:[#allocation4 + $0x4f8] sm:$0xff]
    %v1339 = vld [vmem:[#allocation4 + $0x500] sm:$0xff]
    %v1340 = vld [vmem:[#allocation4 + $0x508] sm:$0xff]
    %v1341 = vld [vmem:[#allocation4 + $0x510] sm:$0xff]
    %v1342 = vld [vmem:[#allocation4 + $0x518] sm:$0xff]
    %v1343 = vld [vmem:[#allocation4 + $0x520] sm:$0xff]
    %v1344 = vld [vmem:[#allocation4 + $0x528] sm:$0xff]
    %v1345 = vld [vmem:[#allocation4 + $0x530] sm:$0xff]
    %v1346 = vld [vmem:[#allocation4 + $0x538] sm:$0xff]
    %v1347 = vld [vmem:[#allocation4 + $0x540] sm:$0xff]
    %v1348 = vld [vmem:[#allocation4 + $0x548] sm:$0xff]
    %v1349 = vld [vmem:[#allocation4 + $0x550] sm:$0xff]
    %v1350 = vld [vmem:[#allocation4 + $0x558] sm:$0xff]
    %v1351 = vld [vmem:[#allocation4 + $0x560] sm:$0xff]
    %v1352 = vld [vmem:[#allocation4 + $0x568] sm:$0xff]
    %v1353 = vld [vmem:[#allocation4 + $0x570] sm:$0xff]
    %v1354 = vld [vmem:[#allocation4 + $0x578] sm:$0xff]
    %v1355 = vld [vmem:[#allocation4 + $0x580] sm:$0xff]
    %v1356 = vld [vmem:[#allocation4 + $0x588] sm:$0xff]
    %v1357 = vld [vmem:[#allocation4 + $0x590] sm:$0xff]
    %v1358 = vld [vmem:[#allocation4 + $0x598] sm:$0xff]
    %v1359 = vld [vmem:[#allocation4 + $0x5a0] sm:$0xff]
    %v1360 = vld [vmem:[#allocation4 + $0x5a8] sm:$0xff]
    %v1361 = vld [vmem:[#allocation4 + $0x5b0] sm:$0xff]
    %v1362 = vld [vmem:[#allocation4 + $0x5b8] sm:$0xff]
    %v1363 = vld [vmem:[#allocation4 + $0x5c0] sm:$0xff]
    %v1364 = vld [vmem:[#allocation4 + $0x5c8] sm:$0xff]
    %v1365 = vld [vmem:[#allocation4 + $0x5d0] sm:$0xff]
    %v1366 = vld [vmem:[#allocation4 + $0x5d8] sm:$0xff]
    %v1367 = vld [vmem:[#allocation4 + $0x5e0] sm:$0xff]
    %v1368 = vld [vmem:[#allocation4 + $0x5e8] sm:$0xff]
    %v1369 = vld [vmem:[#allocation4 + $0x5f0] sm:$0xff]
    %v1370 = vld [vmem:[#allocation4 + $0x5f8] sm:$0xff]
    %v1371 = vld [vmem:[%s6] sm:$0x7]
    %v1373 = vlaneseq
    %v1374 = vshrl.u32 %v1373, 7
    %v1375 = vsub.s32 0, %v1374
    %v1376 = vrot.slane %v1371, %v1375
    %v1377 = vlaneseq
    %v1378 = vshrl.u32 %v1377, 7
    %v1379 = vsub.s32 1, %v1378
    %v1380 = vrot.slane %v1371, %v1379
    %v1381 = vlaneseq
    %v1382 = vshrl.u32 %v1381, 7
    %v1383 = vsub.s32 2, %v1382
    %v1384 = vrot.slane %v1371, %v1383
    %1388 = vmatprep.subr.mxu0 %v1225
    %1389 = vmatpush1.msra.mxu0 %v1224
    %1390 = vmatprep.subr.mxu0 %v1222
    %1391 = vmatpush1.msra.mxu0 %v1221
    %1392 = vmatprep.subr.mxu0 %v1219
    %1393 = vmatpush1.msra.mxu0 %v1218
    %1394 = vmatprep.subr.mxu0 %v1216
    %1395 = vmatpush1.msra.mxu0 %v1215
    %1396 = vmatprep.subr.mxu0 %v1213
    %1397 = vmatpush1.msra.mxu0 %v1212
    %1398 = vmatprep.subr.mxu0 %v1210
    %1399 = vmatpush1.msra.mxu0 %v1209
    %1400 = vmatprep.subr.mxu0 %v1207
    %1401 = vmatpush1.msra.mxu0 %v1206
    %1402 = vmatprep.subr.mxu0 %v1204
    %1403 = vmatpush1.msra.mxu0 %v1203
    %1404 = vmatprep.subr.mxu0 %v1201
    %1405 = vmatpush1.msra.mxu0 %v1200
    %1406 = vmatprep.subr.mxu0 %v1198
    %1407 = vmatpush1.msra.mxu0 %v1197
    %1408 = vmatprep.subr.mxu0 %v1195
    %1409 = vmatpush1.msra.mxu0 %v1194
    %1410 = vmatprep.subr.mxu0 %v1192
    %1411 = vmatpush1.msra.mxu0 %v1191
    %1412 = vmatprep.subr.mxu0 %v1189
    %1413 = vmatpush1.msra.mxu0 %v1188
    %1414 = vmatprep.subr.mxu0 %v1186
    %1415 = vmatpush1.msra.mxu0 %v1185
    %1416 = vmatprep.subr.mxu0 %v1183
    %1417 = vmatpush1.msra.mxu0 %v1182
    %1418 = vmatprep.subr.mxu0 %v1180
    %1419 = vmatpush1.msra.mxu0 %v1179
    %1420 = vmatprep.subr.mxu0 %v1273
    %1421 = vmatpush2.msra.mxu0 %v1272
    %1422 = vmatprep.subr.mxu0 %v1270
    %1423 = vmatpush2.msra.mxu0 %v1269
    %1424 = vmatprep.subr.mxu0 %v1267
    %1425 = vmatpush2.msra.mxu0 %v1266
    %1426 = vmatprep.subr.mxu0 %v1264
    %1427 = vmatpush2.msra.mxu0 %v1263
    %1428 = vmatprep.subr.mxu0 %v1261
    %1429 = vmatpush2.msra.mxu0 %v1260
    %1430 = vmatprep.subr.mxu0 %v1258
    %1431 = vmatpush2.msra.mxu0 %v1257
    %1432 = vmatprep.subr.mxu0 %v1255
    %1433 = vmatpush2.msra.mxu0 %v1254
    %1434 = vmatprep.subr.mxu0 %v1252
    %1435 = vmatpush2.msra.mxu0 %v1251
    %1436 = vmatprep.subr.mxu0 %v1249
    %1437 = vmatpush2.msra.mxu0 %v1248
    %1438 = vmatprep.subr.mxu0 %v1246
    %1439 = vmatpush2.msra.mxu0 %v1245
    %1440 = vmatprep.subr.mxu0 %v1243
    %1441 = vmatpush2.msra.mxu0 %v1242
    %1442 = vmatprep.subr.mxu0 %v1240
    %1443 = vmatpush2.msra.mxu0 %v1239
    %1444 = vmatprep.subr.mxu0 %v1237
    %1445 = vmatpush2.msra.mxu0 %v1236
    %1446 = vmatprep.subr.mxu0 %v1234
    %1447 = vmatpush2.msra.mxu0 %v1233
    %1448 = vmatprep.subr.mxu0 %v1231
    %1449 = vmatpush2.msra.mxu0 %v1230
    %1450 = vmatprep.subr.mxu0 %v1228
    %1451 = vmatpush2.msra.mxu0 %v1227
    %1452 = vmatprep.mubr.f32.mxu0 %v1052
    %1453 = vmatmul.mubr.f32.gmra.mxu0 %v1051
    %v1454 = vpop.f32.mrf.mxu0
    %v1455 = vadd.f32 %v1376, %v1454
    %v1456 = vpop.f32.mrf.mxu0
    %v1457 = vadd.f32 %v1380, %v1456
    %1458 = vmatprep.mubr.f32.mxu0 %v1056
    %1459 = vmatmul.mubr.f32.gmra.mxu0 %v1055
    %v1460 = vpop.f32.mrf.mxu0
    %v1461 = vadd.f32 %v1376, %v1460
    %v1462 = vpop.f32.mrf.mxu0
    %v1463 = vadd.f32 %v1380, %v1462
    %1464 = vmatprep.mubr.f32.mxu0 %v1060
    %1465 = vmatmul.mubr.f32.gmra.mxu0 %v1059
    %v1466 = vpop.f32.mrf.mxu0
    %v1467 = vadd.f32 %v1376, %v1466
    %v1468 = vpop.f32.mrf.mxu0
    %v1469 = vadd.f32 %v1380, %v1468
    %1470 = vmatprep.mubr.f32.mxu0 %v1064
    %1471 = vmatmul.mubr.f32.gmra.mxu0 %v1063
    %v1472 = vpop.f32.mrf.mxu0
    %v1473 = vadd.f32 %v1376, %v1472
    %v1474 = vpop.f32.mrf.mxu0
    %v1475 = vadd.f32 %v1380, %v1474
    %1476 = vmatprep.mubr.f32.mxu0 %v1068
    %1477 = vmatmul.mubr.f32.gmra.mxu0 %v1067
    %v1478 = vpop.f32.mrf.mxu0
    %v1479 = vadd.f32 %v1376, %v1478
    %v1480 = vpop.f32.mrf.mxu0
    %v1481 = vadd.f32 %v1380, %v1480
    %1482 = vmatprep.mubr.f32.mxu0 %v1072
    %1483 = vmatmul.mubr.f32.gmra.mxu0 %v1071
    %v1484 = vpop.f32.mrf.mxu0
    %v1485 = vadd.f32 %v1376, %v1484
    %v1486 = vpop.f32.mrf.mxu0
    %v1487 = vadd.f32 %v1380, %v1486
    %1488 = vmatprep.mubr.f32.mxu0 %v1076
    %1489 = vmatmul.mubr.f32.gmra.mxu0 %v1075
    %v1490 = vpop.f32.mrf.mxu0
    %v1491 = vadd.f32 %v1376, %v1490
    %v1492 = vpop.f32.mrf.mxu0
    %v1493 = vadd.f32 %v1380, %v1492
    %1494 = vmatprep.mubr.f32.mxu0 %v1080
    %1495 = vmatmul.mubr.f32.gmra.mxu0 %v1079
    %v1496 = vpop.f32.mrf.mxu0
    %v1497 = vadd.f32 %v1376, %v1496
    %v1498 = vpop.f32.mrf.mxu0
    %v1499 = vadd.f32 %v1380, %v1498
    %1500 = vmatprep.mubr.f32.mxu0 %v1084
    %1501 = vmatmul.mubr.f32.gmra.mxu0 %v1083
    %v1502 = vpop.f32.mrf.mxu0
    %v1503 = vadd.f32 %v1376, %v1502
    %v1504 = vpop.f32.mrf.mxu0
    %v1505 = vadd.f32 %v1380, %v1504
    %1506 = vmatprep.mubr.f32.mxu0 %v1088
    %1507 = vmatmul.mubr.f32.gmra.mxu0 %v1087
    %v1508 = vpop.f32.mrf.mxu0
    %v1509 = vadd.f32 %v1376, %v1508
    %v1510 = vpop.f32.mrf.mxu0
    %v1511 = vadd.f32 %v1380, %v1510
    %1512 = vmatprep.mubr.f32.mxu0 %v1092
    %1513 = vmatmul.mubr.f32.gmra.mxu0 %v1091
    %v1514 = vpop.f32.mrf.mxu0
    %v1515 = vadd.f32 %v1376, %v1514
    %v1516 = vpop.f32.mrf.mxu0
    %v1517 = vadd.f32 %v1380, %v1516
    %1518 = vmatprep.mubr.f32.mxu0 %v1096
    %1519 = vmatmul.mubr.f32.gmra.mxu0 %v1095
    %v1520 = vpop.f32.mrf.mxu0
    %v1521 = vadd.f32 %v1376, %v1520
    %v1522 = vpop.f32.mrf.mxu0
    %v1523 = vadd.f32 %v1380, %v1522
    %1524 = vmatprep.mubr.f32.mxu0 %v1100
    %1525 = vmatmul.mubr.f32.gmra.mxu0 %v1099
    %v1526 = vpop.f32.mrf.mxu0
    %v1527 = vadd.f32 %v1376, %v1526
    %v1528 = vpop.f32.mrf.mxu0
    %v1529 = vadd.f32 %v1380, %v1528
    %1530 = vmatprep.mubr.f32.mxu0 %v1104
    %1531 = vmatmul.mubr.f32.gmra.mxu0 %v1103
    %v1532 = vpop.f32.mrf.mxu0
    %v1533 = vadd.f32 %v1376, %v1532
    %v1534 = vpop.f32.mrf.mxu0
    %v1535 = vadd.f32 %v1380, %v1534
    %1536 = vmatprep.mubr.f32.mxu0 %v1108
    %1537 = vmatmul.mubr.f32.gmra.mxu0 %v1107
    %v1538 = vpop.f32.mrf.mxu0
    %v1539 = vadd.f32 %v1376, %v1538
    %v1540 = vpop.f32.mrf.mxu0
    %v1541 = vadd.f32 %v1380, %v1540
    %1542 = vmatprep.mubr.f32.mxu0 %v1112
    %1543 = vmatmul.mubr.f32.gmra.mxu0 %v1111
    %v1544 = vpop.f32.mrf.mxu0
    %v1545 = vadd.f32 %v1376, %v1544
    %v1546 = vpop.f32.mrf.mxu0
    %v1547 = vadd.f32 %v1380, %v1546
    %1548 = vmatprep.mubr.f32.mxu0 %v1116
    %1549 = vmatmul.mubr.f32.gmra.mxu0 %v1115
    %v1550 = vpop.f32.mrf.mxu0
    %v1551 = vadd.f32 %v1376, %v1550
    %v1552 = vpop.f32.mrf.mxu0
    %v1553 = vadd.f32 %v1380, %v1552
    %1554 = vmatprep.mubr.f32.mxu0 %v1120
    %1555 = vmatmul.mubr.f32.gmra.mxu0 %v1119
    %v1556 = vpop.f32.mrf.mxu0
    %v1557 = vadd.f32 %v1376, %v1556
    %v1558 = vpop.f32.mrf.mxu0
    %v1559 = vadd.f32 %v1380, %v1558
    %1560 = vmatprep.mubr.f32.mxu0 %v1124
    %1561 = vmatmul.mubr.f32.gmra.mxu0 %v1123
    %v1562 = vpop.f32.mrf.mxu0
    %v1563 = vadd.f32 %v1376, %v1562
    %v1564 = vpop.f32.mrf.mxu0
    %v1565 = vadd.f32 %v1380, %v1564
    %1566 = vmatprep.mubr.f32.mxu0 %v1128
    %1567 = vmatmul.mubr.f32.gmra.mxu0 %v1127
    %v1568 = vpop.f32.mrf.mxu0
    %v1569 = vadd.f32 %v1376, %v1568
    %v1570 = vpop.f32.mrf.mxu0
    %v1571 = vadd.f32 %v1380, %v1570
    %1572 = vmatprep.mubr.f32.mxu0 %v1132
    %1573 = vmatmul.mubr.f32.gmra.mxu0 %v1131
    %v1574 = vpop.f32.mrf.mxu0
    %v1575 = vadd.f32 %v1376, %v1574
    %v1576 = vpop.f32.mrf.mxu0
    %v1577 = vadd.f32 %v1380, %v1576
    %1578 = vmatprep.mubr.f32.mxu0 %v1136
    %1579 = vmatmul.mubr.f32.gmra.mxu0 %v1135
    %v1580 = vpop.f32.mrf.mxu0
    %v1581 = vadd.f32 %v1376, %v1580
    %v1582 = vpop.f32.mrf.mxu0
    %v1583 = vadd.f32 %v1380, %v1582
    %1584 = vmatprep.mubr.f32.mxu0 %v1140
    %1585 = vmatmul.mubr.f32.gmra.mxu0 %v1139
    %v1586 = vpop.f32.mrf.mxu0
    %v1587 = vadd.f32 %v1376, %v1586
    %v1588 = vpop.f32.mrf.mxu0
    %v1589 = vadd.f32 %v1380, %v1588
    %1590 = vmatprep.mubr.f32.mxu0 %v1144
    %1591 = vmatmul.mubr.f32.gmra.mxu0 %v1143
    %v1592 = vpop.f32.mrf.mxu0
    %v1593 = vadd.f32 %v1376, %v1592
    %v1594 = vpop.f32.mrf.mxu0
    %v1595 = vadd.f32 %v1380, %v1594
    %1596 = vmatprep.mubr.f32.mxu0 %v1148
    %1597 = vmatmul.mubr.f32.gmra.mxu0 %v1147
    %v1598 = vpop.f32.mrf.mxu0
    %v1599 = vadd.f32 %v1376, %v1598
    %v1600 = vpop.f32.mrf.mxu0
    %v1601 = vadd.f32 %v1380, %v1600
    %1602 = vmatprep.mubr.f32.mxu0 %v1152
    %1603 = vmatmul.mubr.f32.gmra.mxu0 %v1151
    %v1604 = vpop.f32.mrf.mxu0
    %v1605 = vadd.f32 %v1376, %v1604
    %v1606 = vpop.f32.mrf.mxu0
    %v1607 = vadd.f32 %v1380, %v1606
    %1608 = vmatprep.mubr.f32.mxu0 %v1156
    %1609 = vmatmul.mubr.f32.gmra.mxu0 %v1155
    %v1610 = vpop.f32.mrf.mxu0
    %v1611 = vadd.f32 %v1376, %v1610
    %v1612 = vpop.f32.mrf.mxu0
    %v1613 = vadd.f32 %v1380, %v1612
    %1614 = vmatprep.mubr.f32.mxu0 %v1160
    %1615 = vmatmul.mubr.f32.gmra.mxu0 %v1159
    %v1616 = vpop.f32.mrf.mxu0
    %v1617 = vadd.f32 %v1376, %v1616
    %v1618 = vpop.f32.mrf.mxu0
    %v1619 = vadd.f32 %v1380, %v1618
    %1620 = vmatprep.mubr.f32.mxu0 %v1164
    %1621 = vmatmul.mubr.f32.gmra.mxu0 %v1163
    %v1622 = vpop.f32.mrf.mxu0
    %v1623 = vadd.f32 %v1376, %v1622
    %v1624 = vpop.f32.mrf.mxu0
    %v1625 = vadd.f32 %v1380, %v1624
    %1626 = vmatprep.mubr.f32.mxu0 %v1168
    %1627 = vmatmul.mubr.f32.gmra.mxu0 %v1167
    %v1628 = vpop.f32.mrf.mxu0
    %v1629 = vadd.f32 %v1376, %v1628
    %v1630 = vpop.f32.mrf.mxu0
    %v1631 = vadd.f32 %v1380, %v1630
    %1632 = vmatprep.mubr.f32.mxu0 %v1172
    %1633 = vmatmul.mubr.f32.gmra.mxu0 %v1171
    %v1634 = vpop.f32.mrf.mxu0
    %v1635 = vadd.f32 %v1376, %v1634
    %v1636 = vpop.f32.mrf.mxu0
    %v1637 = vadd.f32 %v1380, %v1636
    %1638 = vmatprep.mubr.f32.mxu0 %v1176
    %1639 = vmatmul.mubr.f32.gmra.mxu0 %v1175
    %v1640 = vpop.f32.mrf.mxu0
    %v1641 = vadd.f32 %v1376, %v1640
    %v1642 = vpop.f32.mrf.mxu0
    %v1643 = vadd.f32 %v1380, %v1642
    %1644 = vdwg.mxu0
    %1645 = vmatprep.subr.mxu0 %v1321
    %1646 = vmatpush1.msra.mxu0 %v1320
    %1647 = vmatprep.subr.mxu0 %v1318
    %1648 = vmatpush1.msra.mxu0 %v1317
    %1649 = vmatprep.subr.mxu0 %v1315
    %1650 = vmatpush1.msra.mxu0 %v1314
    %1651 = vmatprep.subr.mxu0 %v1312
    %1652 = vmatpush1.msra.mxu0 %v1311
    %1653 = vmatprep.subr.mxu0 %v1309
    %1654 = vmatpush1.msra.mxu0 %v1308
    %1655 = vmatprep.subr.mxu0 %v1306
    %1656 = vmatpush1.msra.mxu0 %v1305
    %1657 = vmatprep.subr.mxu0 %v1303
    %1658 = vmatpush1.msra.mxu0 %v1302
    %1659 = vmatprep.subr.mxu0 %v1300
    %1660 = vmatpush1.msra.mxu0 %v1299
    %1661 = vmatprep.subr.mxu0 %v1297
    %1662 = vmatpush1.msra.mxu0 %v1296
    %1663 = vmatprep.subr.mxu0 %v1294
    %1664 = vmatpush1.msra.mxu0 %v1293
    %1665 = vmatprep.subr.mxu0 %v1291
    %1666 = vmatpush1.msra.mxu0 %v1290
    %1667 = vmatprep.subr.mxu0 %v1288
    %1668 = vmatpush1.msra.mxu0 %v1287
    %1669 = vmatprep.subr.mxu0 %v1285
    %1670 = vmatpush1.msra.mxu0 %v1284
    %1671 = vmatprep.subr.mxu0 %v1282
    %1672 = vmatpush1.msra.mxu0 %v1281
    %1673 = vmatprep.subr.mxu0 %v1279
    %1674 = vmatpush1.msra.mxu0 %v1278
    %1675 = vmatprep.subr.mxu0 %v1276
    %1676 = vmatpush1.msra.mxu0 %v1275
    %1677 = vmatprep.subr.mxu0 %v1369
    %1678 = vmatpush2.msra.mxu0 %v1368
    %1679 = vmatprep.subr.mxu0 %v1366
    %1680 = vmatpush2.msra.mxu0 %v1365
    %1681 = vmatprep.subr.mxu0 %v1363
    %1682 = vmatpush2.msra.mxu0 %v1362
    %1683 = vmatprep.subr.mxu0 %v1360
    %1684 = vmatpush2.msra.mxu0 %v1359
    %1685 = vmatprep.subr.mxu0 %v1357
    %1686 = vmatpush2.msra.mxu0 %v1356
    %1687 = vmatprep.subr.mxu0 %v1354
    %1688 = vmatpush2.msra.mxu0 %v1353
    %1689 = vmatprep.subr.mxu0 %v1351
    %1690 = vmatpush2.msra.mxu0 %v1350
    %1691 = vmatprep.subr.mxu0 %v1348
    %1692 = vmatpush2.msra.mxu0 %v1347
    %1693 = vmatprep.subr.mxu0 %v1345
    %1694 = vmatpush2.msra.mxu0 %v1344
    %1695 = vmatprep.subr.mxu0 %v1342
    %1696 = vmatpush2.msra.mxu0 %v1341
    %1697 = vmatprep.subr.mxu0 %v1339
    %1698 = vmatpush2.msra.mxu0 %v1338
    %1699 = vmatprep.subr.mxu0 %v1336
    %1700 = vmatpush2.msra.mxu0 %v1335
    %1701 = vmatprep.subr.mxu0 %v1333
    %1702 = vmatpush2.msra.mxu0 %v1332
    %1703 = vmatprep.subr.mxu0 %v1330
    %1704 = vmatpush2.msra.mxu0 %v1329
    %1705 = vmatprep.subr.mxu0 %v1327
    %1706 = vmatpush2.msra.mxu0 %v1326
    %1707 = vmatprep.subr.mxu0 %v1324
    %1708 = vmatpush2.msra.mxu0 %v1323
    %1709 = vmatprep.mubr.f32.mxu0 %v1054
    %1710 = vmatmul.mubr.f32.gmra.mxu0 %v1053
    %v1711 = vpop.f32.mrf.mxu0
    %v1712 = vadd.f32 %v1455, %v1711
    %v1713 = vpop.f32.mrf.mxu0
    %v1714 = vadd.f32 %v1457, %v1713
    %1715 = vmatprep.mubr.f32.mxu0 %v1058
    %1716 = vmatmul.mubr.f32.gmra.mxu0 %v1057
    %v1717 = vpop.f32.mrf.mxu0
    %v1718 = vadd.f32 %v1461, %v1717
    %v1719 = vpop.f32.mrf.mxu0
    %v1720 = vadd.f32 %v1463, %v1719
    %1721 = vmatprep.mubr.f32.mxu0 %v1062
    %1722 = vmatmul.mubr.f32.gmra.mxu0 %v1061
    %v1723 = vpop.f32.mrf.mxu0
    %v1724 = vadd.f32 %v1467, %v1723
    %v1725 = vpop.f32.mrf.mxu0
    %v1726 = vadd.f32 %v1469, %v1725
    %1727 = vmatprep.mubr.f32.mxu0 %v1066
    %1728 = vmatmul.mubr.f32.gmra.mxu0 %v1065
    %v1729 = vpop.f32.mrf.mxu0
    %v1730 = vadd.f32 %v1473, %v1729
    %v1731 = vpop.f32.mrf.mxu0
    %v1732 = vadd.f32 %v1475, %v1731
    %1733 = vmatprep.mubr.f32.mxu0 %v1070
    %1734 = vmatmul.mubr.f32.gmra.mxu0 %v1069
    %v1735 = vpop.f32.mrf.mxu0
    %v1736 = vadd.f32 %v1479, %v1735
    %v1737 = vpop.f32.mrf.mxu0
    %v1738 = vadd.f32 %v1481, %v1737
    %1739 = vmatprep.mubr.f32.mxu0 %v1074
    %1740 = vmatmul.mubr.f32.gmra.mxu0 %v1073
    %v1741 = vpop.f32.mrf.mxu0
    %v1742 = vadd.f32 %v1485, %v1741
    %v1743 = vpop.f32.mrf.mxu0
    %v1744 = vadd.f32 %v1487, %v1743
    %1745 = vmatprep.mubr.f32.mxu0 %v1078
    %1746 = vmatmul.mubr.f32.gmra.mxu0 %v1077
    %v1747 = vpop.f32.mrf.mxu0
    %v1748 = vadd.f32 %v1491, %v1747
    %v1749 = vpop.f32.mrf.mxu0
    %v1750 = vadd.f32 %v1493, %v1749
    %1751 = vmatprep.mubr.f32.mxu0 %v1082
    %1752 = vmatmul.mubr.f32.gmra.mxu0 %v1081
    %v1753 = vpop.f32.mrf.mxu0
    %v1754 = vadd.f32 %v1497, %v1753
    %v1755 = vpop.f32.mrf.mxu0
    %v1756 = vadd.f32 %v1499, %v1755
    %1757 = vmatprep.mubr.f32.mxu0 %v1086
    %1758 = vmatmul.mubr.f32.gmra.mxu0 %v1085
    %v1759 = vpop.f32.mrf.mxu0
    %v1760 = vadd.f32 %v1503, %v1759
    %v1761 = vpop.f32.mrf.mxu0
    %v1762 = vadd.f32 %v1505, %v1761
    %1763 = vmatprep.mubr.f32.mxu0 %v1090
    %1764 = vmatmul.mubr.f32.gmra.mxu0 %v1089
    %v1765 = vpop.f32.mrf.mxu0
    %v1766 = vadd.f32 %v1509, %v1765
    %v1767 = vpop.f32.mrf.mxu0
    %v1768 = vadd.f32 %v1511, %v1767
    %1769 = vmatprep.mubr.f32.mxu0 %v1094
    %1770 = vmatmul.mubr.f32.gmra.mxu0 %v1093
    %v1771 = vpop.f32.mrf.mxu0
    %v1772 = vadd.f32 %v1515, %v1771
    %v1773 = vpop.f32.mrf.mxu0
    %v1774 = vadd.f32 %v1517, %v1773
    %1775 = vmatprep.mubr.f32.mxu0 %v1098
    %1776 = vmatmul.mubr.f32.gmra.mxu0 %v1097
    %v1777 = vpop.f32.mrf.mxu0
    %v1778 = vadd.f32 %v1521, %v1777
    %v1779 = vpop.f32.mrf.mxu0
    %v1780 = vadd.f32 %v1523, %v1779
    %1781 = vmatprep.mubr.f32.mxu0 %v1102
    %1782 = vmatmul.mubr.f32.gmra.mxu0 %v1101
    %v1783 = vpop.f32.mrf.mxu0
    %v1784 = vadd.f32 %v1527, %v1783
    %v1785 = vpop.f32.mrf.mxu0
    %v1786 = vadd.f32 %v1529, %v1785
    %1787 = vmatprep.mubr.f32.mxu0 %v1106
    %1788 = vmatmul.mubr.f32.gmra.mxu0 %v1105
    %v1789 = vpop.f32.mrf.mxu0
    %v1790 = vadd.f32 %v1533, %v1789
    %v1791 = vpop.f32.mrf.mxu0
    %v1792 = vadd.f32 %v1535, %v1791
    %1793 = vmatprep.mubr.f32.mxu0 %v1110
    %1794 = vmatmul.mubr.f32.gmra.mxu0 %v1109
    %v1795 = vpop.f32.mrf.mxu0
    %v1796 = vadd.f32 %v1539, %v1795
    %v1797 = vpop.f32.mrf.mxu0
    %v1798 = vadd.f32 %v1541, %v1797
    %1799 = vmatprep.mubr.f32.mxu0 %v1114
    %1800 = vmatmul.mubr.f32.gmra.mxu0 %v1113
    %v1801 = vpop.f32.mrf.mxu0
    %v1802 = vadd.f32 %v1545, %v1801
    %v1803 = vpop.f32.mrf.mxu0
    %v1804 = vadd.f32 %v1547, %v1803
    %1805 = vmatprep.mubr.f32.mxu0 %v1118
    %1806 = vmatmul.mubr.f32.gmra.mxu0 %v1117
    %v1807 = vpop.f32.mrf.mxu0
    %v1808 = vadd.f32 %v1551, %v1807
    %v1809 = vpop.f32.mrf.mxu0
    %v1810 = vadd.f32 %v1553, %v1809
    %1811 = vmatprep.mubr.f32.mxu0 %v1122
    %1812 = vmatmul.mubr.f32.gmra.mxu0 %v1121
    %v1813 = vpop.f32.mrf.mxu0
    %v1814 = vadd.f32 %v1557, %v1813
    %v1815 = vpop.f32.mrf.mxu0
    %v1816 = vadd.f32 %v1559, %v1815
    %1817 = vmatprep.mubr.f32.mxu0 %v1126
    %1818 = vmatmul.mubr.f32.gmra.mxu0 %v1125
    %v1819 = vpop.f32.mrf.mxu0
    %v1820 = vadd.f32 %v1563, %v1819
    %v1821 = vpop.f32.mrf.mxu0
    %v1822 = vadd.f32 %v1565, %v1821
    %1823 = vmatprep.mubr.f32.mxu0 %v1130
    %1824 = vmatmul.mubr.f32.gmra.mxu0 %v1129
    %v1825 = vpop.f32.mrf.mxu0
    %v1826 = vadd.f32 %v1569, %v1825
    %v1827 = vpop.f32.mrf.mxu0
    %v1828 = vadd.f32 %v1571, %v1827
    %1829 = vmatprep.mubr.f32.mxu0 %v1134
    %1830 = vmatmul.mubr.f32.gmra.mxu0 %v1133
    %v1831 = vpop.f32.mrf.mxu0
    %v1832 = vadd.f32 %v1575, %v1831
    %v1833 = vpop.f32.mrf.mxu0
    %v1834 = vadd.f32 %v1577, %v1833
    %1835 = vmatprep.mubr.f32.mxu0 %v1138
    %1836 = vmatmul.mubr.f32.gmra.mxu0 %v1137
    %v1837 = vpop.f32.mrf.mxu0
    %v1838 = vadd.f32 %v1581, %v1837
    %v1839 = vpop.f32.mrf.mxu0
    %v1840 = vadd.f32 %v1583, %v1839
    %1841 = vmatprep.mubr.f32.mxu0 %v1142
    %1842 = vmatmul.mubr.f32.gmra.mxu0 %v1141
    %v1843 = vpop.f32.mrf.mxu0
    %v1844 = vadd.f32 %v1587, %v1843
    %v1845 = vpop.f32.mrf.mxu0
    %v1846 = vadd.f32 %v1589, %v1845
    %1847 = vmatprep.mubr.f32.mxu0 %v1146
    %1848 = vmatmul.mubr.f32.gmra.mxu0 %v1145
    %v1849 = vpop.f32.mrf.mxu0
    %v1850 = vadd.f32 %v1593, %v1849
    %v1851 = vpop.f32.mrf.mxu0
    %v1852 = vadd.f32 %v1595, %v1851
    %1853 = vmatprep.mubr.f32.mxu0 %v1150
    %1854 = vmatmul.mubr.f32.gmra.mxu0 %v1149
    %v1855 = vpop.f32.mrf.mxu0
    %v1856 = vadd.f32 %v1599, %v1855
    %v1857 = vpop.f32.mrf.mxu0
    %v1858 = vadd.f32 %v1601, %v1857
    %1859 = vmatprep.mubr.f32.mxu0 %v1154
    %1860 = vmatmul.mubr.f32.gmra.mxu0 %v1153
    %v1861 = vpop.f32.mrf.mxu0
    %v1862 = vadd.f32 %v1605, %v1861
    %v1863 = vpop.f32.mrf.mxu0
    %v1864 = vadd.f32 %v1607, %v1863
    %1865 = vmatprep.mubr.f32.mxu0 %v1158
    %1866 = vmatmul.mubr.f32.gmra.mxu0 %v1157
    %v1867 = vpop.f32.mrf.mxu0
    %v1868 = vadd.f32 %v1611, %v1867
    %v1869 = vpop.f32.mrf.mxu0
    %v1870 = vadd.f32 %v1613, %v1869
    %1871 = vmatprep.mubr.f32.mxu0 %v1162
    %1872 = vmatmul.mubr.f32.gmra.mxu0 %v1161
    %v1873 = vpop.f32.mrf.mxu0
    %v1874 = vadd.f32 %v1617, %v1873
    %v1875 = vpop.f32.mrf.mxu0
    %v1876 = vadd.f32 %v1619, %v1875
    %1877 = vmatprep.mubr.f32.mxu0 %v1166
    %1878 = vmatmul.mubr.f32.gmra.mxu0 %v1165
    %v1879 = vpop.f32.mrf.mxu0
    %v1880 = vadd.f32 %v1623, %v1879
    %v1881 = vpop.f32.mrf.mxu0
    %v1882 = vadd.f32 %v1625, %v1881
    %1883 = vmatprep.mubr.f32.mxu0 %v1170
    %1884 = vmatmul.mubr.f32.gmra.mxu0 %v1169
    %v1885 = vpop.f32.mrf.mxu0
    %v1886 = vadd.f32 %v1629, %v1885
    %v1887 = vpop.f32.mrf.mxu0
    %v1888 = vadd.f32 %v1631, %v1887
    %1889 = vmatprep.mubr.f32.mxu0 %v1174
    %1890 = vmatmul.mubr.f32.gmra.mxu0 %v1173
    %v1891 = vpop.f32.mrf.mxu0
    %v1892 = vadd.f32 %v1635, %v1891
    %v1893 = vpop.f32.mrf.mxu0
    %v1894 = vadd.f32 %v1637, %v1893
    %1895 = vmatprep.mubr.f32.mxu0 %v1178
    %1896 = vmatmul.mubr.f32.gmra.mxu0 %v1177
    %v1897 = vpop.f32.mrf.mxu0
    %v1898 = vadd.f32 %v1641, %v1897
    %v1899 = vpop.f32.mrf.mxu0
    %v1900 = vadd.f32 %v1643, %v1899
    %1901 = vdwg.mxu0
    %1902 = vmatprep.subr.mxu0 0.0
    %1903 = vmatpush1.msra.mxu0 %v1226
    %1904 = vmatprep.subr.mxu0 0.0
    %1905 = vmatpush1.msra.mxu0 %v1223
    %1906 = vmatprep.subr.mxu0 0.0
    %1907 = vmatpush1.msra.mxu0 %v1220
    %1908 = vmatprep.subr.mxu0 0.0
    %1909 = vmatpush1.msra.mxu0 %v1217
    %1910 = vmatprep.subr.mxu0 0.0
    %1911 = vmatpush1.msra.mxu0 %v1214
    %1912 = vmatprep.subr.mxu0 0.0
    %1913 = vmatpush1.msra.mxu0 %v1211
    %1914 = vmatprep.subr.mxu0 0.0
    %1915 = vmatpush1.msra.mxu0 %v1208
    %1916 = vmatprep.subr.mxu0 0.0
    %1917 = vmatpush1.msra.mxu0 %v1205
    %1918 = vmatprep.subr.mxu0 0.0
    %1919 = vmatpush1.msra.mxu0 %v1202
    %1920 = vmatprep.subr.mxu0 0.0
    %1921 = vmatpush1.msra.mxu0 %v1199
    %1922 = vmatprep.subr.mxu0 0.0
    %1923 = vmatpush1.msra.mxu0 %v1196
    %1924 = vmatprep.subr.mxu0 0.0
    %1925 = vmatpush1.msra.mxu0 %v1193
    %1926 = vmatprep.subr.mxu0 0.0
    %1927 = vmatpush1.msra.mxu0 %v1190
    %1928 = vmatprep.subr.mxu0 0.0
    %1929 = vmatpush1.msra.mxu0 %v1187
    %1930 = vmatprep.subr.mxu0 0.0
    %1931 = vmatpush1.msra.mxu0 %v1184
    %1932 = vmatprep.subr.mxu0 0.0
    %1933 = vmatpush1.msra.mxu0 %v1181
    %1934 = vmatprep.subr.mxu0 0.0
    %1935 = vmatpush2.msra.mxu0 %v1274
    %1936 = vmatprep.subr.mxu0 0.0
    %1937 = vmatpush2.msra.mxu0 %v1271
    %1938 = vmatprep.subr.mxu0 0.0
    %1939 = vmatpush2.msra.mxu0 %v1268
    %1940 = vmatprep.subr.mxu0 0.0
    %1941 = vmatpush2.msra.mxu0 %v1265
    %1942 = vmatprep.subr.mxu0 0.0
    %1943 = vmatpush2.msra.mxu0 %v1262
    %1944 = vmatprep.subr.mxu0 0.0
    %1945 = vmatpush2.msra.mxu0 %v1259
    %1946 = vmatprep.subr.mxu0 0.0
    %1947 = vmatpush2.msra.mxu0 %v1256
    %1948 = vmatprep.subr.mxu0 0.0
    %1949 = vmatpush2.msra.mxu0 %v1253
    %1950 = vmatprep.subr.mxu0 0.0
    %1951 = vmatpush2.msra.mxu0 %v1250
    %1952 = vmatprep.subr.mxu0 0.0
    %1953 = vmatpush2.msra.mxu0 %v1247
    %1954 = vmatprep.subr.mxu0 0.0
    %1955 = vmatpush2.msra.mxu0 %v1244
    %1956 = vmatprep.subr.mxu0 0.0
    %1957 = vmatpush2.msra.mxu0 %v1241
    %1958 = vmatprep.subr.mxu0 0.0
    %1959 = vmatpush2.msra.mxu0 %v1238
    %1960 = vmatprep.subr.mxu0 0.0
    %1961 = vmatpush2.msra.mxu0 %v1235
    %1962 = vmatprep.subr.mxu0 0.0
    %1963 = vmatpush2.msra.mxu0 %v1232
    %1964 = vmatprep.subr.mxu0 0.0
    %1965 = vmatpush2.msra.mxu0 %v1229
    %1966 = vmatprep.mubr.f32.mxu0 %v1052
    %1967 = vmatmul.mubr.f32.gmra.mxu0 %v1051
    %v1968 = vpop.f32.mrf.mxu0
    %v1969 = vadd.f32 %v1384, %v1968
    %v1970 = vpop.f32.mrf.mxu0
    %1971 = vmatprep.mubr.f32.mxu0 %v1056
    %1972 = vmatmul.mubr.f32.gmra.mxu0 %v1055
    %v1973 = vpop.f32.mrf.mxu0
    %v1974 = vadd.f32 %v1384, %v1973
    %v1975 = vpop.f32.mrf.mxu0
    %1976 = vmatprep.mubr.f32.mxu0 %v1060
    %1977 = vmatmul.mubr.f32.gmra.mxu0 %v1059
    %v1978 = vpop.f32.mrf.mxu0
    %v1979 = vadd.f32 %v1384, %v1978
    %v1980 = vpop.f32.mrf.mxu0
    %1981 = vmatprep.mubr.f32.mxu0 %v1064
    %1982 = vmatmul.mubr.f32.gmra.mxu0 %v1063
    %v1983 = vpop.f32.mrf.mxu0
    %v1984 = vadd.f32 %v1384, %v1983
    %v1985 = vpop.f32.mrf.mxu0
    %1986 = vmatprep.mubr.f32.mxu0 %v1068
    %1987 = vmatmul.mubr.f32.gmra.mxu0 %v1067
    %v1988 = vpop.f32.mrf.mxu0
    %v1989 = vadd.f32 %v1384, %v1988
    %v1990 = vpop.f32.mrf.mxu0
    %1991 = vmatprep.mubr.f32.mxu0 %v1072
    %1992 = vmatmul.mubr.f32.gmra.mxu0 %v1071
    %v1993 = vpop.f32.mrf.mxu0
    %v1994 = vadd.f32 %v1384, %v1993
    %v1995 = vpop.f32.mrf.mxu0
    %1996 = vmatprep.mubr.f32.mxu0 %v1076
    %1997 = vmatmul.mubr.f32.gmra.mxu0 %v1075
    %v1998 = vpop.f32.mrf.mxu0
    %v1999 = vadd.f32 %v1384, %v1998
    %v2000 = vpop.f32.mrf.mxu0
    %2001 = vmatprep.mubr.f32.mxu0 %v1080
    %2002 = vmatmul.mubr.f32.gmra.mxu0 %v1079
    %v2003 = vpop.f32.mrf.mxu0
    %v2004 = vadd.f32 %v1384, %v2003
    %v2005 = vpop.f32.mrf.mxu0
    %2006 = vmatprep.mubr.f32.mxu0 %v1084
    %2007 = vmatmul.mubr.f32.gmra.mxu0 %v1083
    %v2008 = vpop.f32.mrf.mxu0
    %v2009 = vadd.f32 %v1384, %v2008
    %v2010 = vpop.f32.mrf.mxu0
    %2011 = vmatprep.mubr.f32.mxu0 %v1088
    %2012 = vmatmul.mubr.f32.gmra.mxu0 %v1087
    %v2013 = vpop.f32.mrf.mxu0
    %v2014 = vadd.f32 %v1384, %v2013
    %v2015 = vpop.f32.mrf.mxu0
    %2016 = vmatprep.mubr.f32.mxu0 %v1092
    %2017 = vmatmul.mubr.f32.gmra.mxu0 %v1091
    %v2018 = vpop.f32.mrf.mxu0
    %v2019 = vadd.f32 %v1384, %v2018
    %v2020 = vpop.f32.mrf.mxu0
    %2021 = vmatprep.mubr.f32.mxu0 %v1096
    %2022 = vmatmul.mubr.f32.gmra.mxu0 %v1095
    %v2023 = vpop.f32.mrf.mxu0
    %v2024 = vadd.f32 %v1384, %v2023
    %v2025 = vpop.f32.mrf.mxu0
    %2026 = vmatprep.mubr.f32.mxu0 %v1100
    %2027 = vmatmul.mubr.f32.gmra.mxu0 %v1099
    %v2028 = vpop.f32.mrf.mxu0
    %v2029 = vadd.f32 %v1384, %v2028
    %v2030 = vpop.f32.mrf.mxu0
    %2031 = vmatprep.mubr.f32.mxu0 %v1104
    %2032 = vmatmul.mubr.f32.gmra.mxu0 %v1103
    %v2033 = vpop.f32.mrf.mxu0
    %v2034 = vadd.f32 %v1384, %v2033
    %v2035 = vpop.f32.mrf.mxu0
    %2036 = vmatprep.mubr.f32.mxu0 %v1108
    %2037 = vmatmul.mubr.f32.gmra.mxu0 %v1107
    %v2038 = vpop.f32.mrf.mxu0
    %v2039 = vadd.f32 %v1384, %v2038
    %v2040 = vpop.f32.mrf.mxu0
    %2041 = vmatprep.mubr.f32.mxu0 %v1112
    %2042 = vmatmul.mubr.f32.gmra.mxu0 %v1111
    %v2043 = vpop.f32.mrf.mxu0
    %v2044 = vadd.f32 %v1384, %v2043
    %v2045 = vpop.f32.mrf.mxu0
    %2046 = vmatprep.mubr.f32.mxu0 %v1116
    %2047 = vmatmul.mubr.f32.gmra.mxu0 %v1115
    %v2048 = vpop.f32.mrf.mxu0
    %v2049 = vadd.f32 %v1384, %v2048
    %v2050 = vpop.f32.mrf.mxu0
    %2051 = vmatprep.mubr.f32.mxu0 %v1120
    %2052 = vmatmul.mubr.f32.gmra.mxu0 %v1119
    %v2053 = vpop.f32.mrf.mxu0
    %v2054 = vadd.f32 %v1384, %v2053
    %v2055 = vpop.f32.mrf.mxu0
    %2056 = vmatprep.mubr.f32.mxu0 %v1124
    %2057 = vmatmul.mubr.f32.gmra.mxu0 %v1123
    %v2058 = vpop.f32.mrf.mxu0
    %v2059 = vadd.f32 %v1384, %v2058
    %v2060 = vpop.f32.mrf.mxu0
    %2061 = vmatprep.mubr.f32.mxu0 %v1128
    %2062 = vmatmul.mubr.f32.gmra.mxu0 %v1127
    %v2063 = vpop.f32.mrf.mxu0
    %v2064 = vadd.f32 %v1384, %v2063
    %v2065 = vpop.f32.mrf.mxu0
    %2066 = vmatprep.mubr.f32.mxu0 %v1132
    %2067 = vmatmul.mubr.f32.gmra.mxu0 %v1131
    %v2068 = vpop.f32.mrf.mxu0
    %v2069 = vadd.f32 %v1384, %v2068
    %v2070 = vpop.f32.mrf.mxu0
    %2071 = vmatprep.mubr.f32.mxu0 %v1136
    %2072 = vmatmul.mubr.f32.gmra.mxu0 %v1135
    %v2073 = vpop.f32.mrf.mxu0
    %v2074 = vadd.f32 %v1384, %v2073
    %v2075 = vpop.f32.mrf.mxu0
    %2076 = vmatprep.mubr.f32.mxu0 %v1140
    %2077 = vmatmul.mubr.f32.gmra.mxu0 %v1139
    %v2078 = vpop.f32.mrf.mxu0
    %v2079 = vadd.f32 %v1384, %v2078
    %v2080 = vpop.f32.mrf.mxu0
    %2081 = vmatprep.mubr.f32.mxu0 %v1144
    %2082 = vmatmul.mubr.f32.gmra.mxu0 %v1143
    %v2083 = vpop.f32.mrf.mxu0
    %v2084 = vadd.f32 %v1384, %v2083
    %v2085 = vpop.f32.mrf.mxu0
    %2086 = vmatprep.mubr.f32.mxu0 %v1148
    %2087 = vmatmul.mubr.f32.gmra.mxu0 %v1147
    %v2088 = vpop.f32.mrf.mxu0
    %v2089 = vadd.f32 %v1384, %v2088
    %v2090 = vpop.f32.mrf.mxu0
    %2091 = vmatprep.mubr.f32.mxu0 %v1152
    %2092 = vmatmul.mubr.f32.gmra.mxu0 %v1151
    %v2093 = vpop.f32.mrf.mxu0
    %v2094 = vadd.f32 %v1384, %v2093
    %v2095 = vpop.f32.mrf.mxu0
    %2096 = vmatprep.mubr.f32.mxu0 %v1156
    %2097 = vmatmul.mubr.f32.gmra.mxu0 %v1155
    %v2098 = vpop.f32.mrf.mxu0
    %v2099 = vadd.f32 %v1384, %v2098
    %v2100 = vpop.f32.mrf.mxu0
    %2101 = vmatprep.mubr.f32.mxu0 %v1160
    %2102 = vmatmul.mubr.f32.gmra.mxu0 %v1159
    %v2103 = vpop.f32.mrf.mxu0
    %v2104 = vadd.f32 %v1384, %v2103
    %v2105 = vpop.f32.mrf.mxu0
    %2106 = vmatprep.mubr.f32.mxu0 %v1164
    %2107 = vmatmul.mubr.f32.gmra.mxu0 %v1163
    %v2108 = vpop.f32.mrf.mxu0
    %v2109 = vadd.f32 %v1384, %v2108
    %v2110 = vpop.f32.mrf.mxu0
    %2111 = vmatprep.mubr.f32.mxu0 %v1168
    %2112 = vmatmul.mubr.f32.gmra.mxu0 %v1167
    %v2113 = vpop.f32.mrf.mxu0
    %v2114 = vadd.f32 %v1384, %v2113
    %v2115 = vpop.f32.mrf.mxu0
    %2116 = vmatprep.mubr.f32.mxu0 %v1172
    %2117 = vmatmul.mubr.f32.gmra.mxu0 %v1171
    %v2118 = vpop.f32.mrf.mxu0
    %v2119 = vadd.f32 %v1384, %v2118
    %v2120 = vpop.f32.mrf.mxu0
    %2121 = vmatprep.mubr.f32.mxu0 %v1176
    %2122 = vmatmul.mubr.f32.gmra.mxu0 %v1175
    %v2123 = vpop.f32.mrf.mxu0
    %v2124 = vadd.f32 %v1384, %v2123
    %v2125 = vpop.f32.mrf.mxu0
    %2126 = vdwg.mxu0
    %2127 = vmatprep.subr.mxu0 0.0
    %2128 = vmatpush1.msra.mxu0 %v1322
    %2129 = vmatprep.subr.mxu0 0.0
    %2130 = vmatpush1.msra.mxu0 %v1319
    %2131 = vmatprep.subr.mxu0 0.0
    %2132 = vmatpush1.msra.mxu0 %v1316
    %2133 = vmatprep.subr.mxu0 0.0
    %2134 = vmatpush1.msra.mxu0 %v1313
    %2135 = vmatprep.subr.mxu0 0.0
    %2136 = vmatpush1.msra.mxu0 %v1310
    %2137 = vmatprep.subr.mxu0 0.0
    %2138 = vmatpush1.msra.mxu0 %v1307
    %2139 = vmatprep.subr.mxu0 0.0
    %2140 = vmatpush1.msra.mxu0 %v1304
    %2141 = vmatprep.subr.mxu0 0.0
    %2142 = vmatpush1.msra.mxu0 %v1301
    %2143 = vmatprep.subr.mxu0 0.0
    %2144 = vmatpush1.msra.mxu0 %v1298
    %2145 = vmatprep.subr.mxu0 0.0
    %2146 = vmatpush1.msra.mxu0 %v1295
    %2147 = vmatprep.subr.mxu0 0.0
    %2148 = vmatpush1.msra.mxu0 %v1292
    %2149 = vmatprep.subr.mxu0 0.0
    %2150 = vmatpush1.msra.mxu0 %v1289
    %2151 = vmatprep.subr.mxu0 0.0
    %2152 = vmatpush1.msra.mxu0 %v1286
    %2153 = vmatprep.subr.mxu0 0.0
    %2154 = vmatpush1.msra.mxu0 %v1283
    %2155 = vmatprep.subr.mxu0 0.0
    %2156 = vmatpush1.msra.mxu0 %v1280
    %2157 = vmatprep.subr.mxu0 0.0
    %2158 = vmatpush1.msra.mxu0 %v1277
    %2159 = vmatprep.subr.mxu0 0.0
    %2160 = vmatpush2.msra.mxu0 %v1370
    %2161 = vmatprep.subr.mxu0 0.0
    %2162 = vmatpush2.msra.mxu0 %v1367
    %2163 = vmatprep.subr.mxu0 0.0
    %2164 = vmatpush2.msra.mxu0 %v1364
    %2165 = vmatprep.subr.mxu0 0.0
    %2166 = vmatpush2.msra.mxu0 %v1361
    %2167 = vmatprep.subr.mxu0 0.0
    %2168 = vmatpush2.msra.mxu0 %v1358
    %2169 = vmatprep.subr.mxu0 0.0
    %2170 = vmatpush2.msra.mxu0 %v1355
    %2171 = vmatprep.subr.mxu0 0.0
    %2172 = vmatpush2.msra.mxu0 %v1352
    %2173 = vmatprep.subr.mxu0 0.0
    %2174 = vmatpush2.msra.mxu0 %v1349
    %2175 = vmatprep.subr.mxu0 0.0
    %2176 = vmatpush2.msra.mxu0 %v1346
    %2177 = vmatprep.subr.mxu0 0.0
    %2178 = vmatpush2.msra.mxu0 %v1343
    %2179 = vmatprep.subr.mxu0 0.0
    %2180 = vmatpush2.msra.mxu0 %v1340
    %2181 = vmatprep.subr.mxu0 0.0
    %2182 = vmatpush2.msra.mxu0 %v1337
    %2183 = vmatprep.subr.mxu0 0.0
    %2184 = vmatpush2.msra.mxu0 %v1334
    %2185 = vmatprep.subr.mxu0 0.0
    %2186 = vmatpush2.msra.mxu0 %v1331
    %2187 = vmatprep.subr.mxu0 0.0
    %2188 = vmatpush2.msra.mxu0 %v1328
    %2189 = vmatprep.subr.mxu0 0.0
    %2190 = vmatpush2.msra.mxu0 %v1325
    %2191 = vmatprep.mubr.f32.mxu0 %v1054
    %2192 = vmatmul.mubr.f32.gmra.mxu0 %v1053
    %v2193 = vpop.f32.mrf.mxu0
    %v2194 = vadd.f32 %v1969, %v2193
    %v2195 = vpop.f32.mrf.mxu0
    %2196 = vmatprep.mubr.f32.mxu0 %v1058
    %2197 = vmatmul.mubr.f32.gmra.mxu0 %v1057
    %v2198 = vpop.f32.mrf.mxu0
    %v2199 = vadd.f32 %v1974, %v2198
    %v2200 = vpop.f32.mrf.mxu0
    %2201 = vmatprep.mubr.f32.mxu0 %v1062
    %2202 = vmatmul.mubr.f32.gmra.mxu0 %v1061
    %v2203 = vpop.f32.mrf.mxu0
    %v2204 = vadd.f32 %v1979, %v2203
    %v2205 = vpop.f32.mrf.mxu0
    %2206 = vmatprep.mubr.f32.mxu0 %v1066
    %2207 = vmatmul.mubr.f32.gmra.mxu0 %v1065
    %v2208 = vpop.f32.mrf.mxu0
    %v2209 = vadd.f32 %v1984, %v2208
    %v2210 = vpop.f32.mrf.mxu0
    %2211 = vmatprep.mubr.f32.mxu0 %v1070
    %2212 = vmatmul.mubr.f32.gmra.mxu0 %v1069
    %v2213 = vpop.f32.mrf.mxu0
    %v2214 = vadd.f32 %v1989, %v2213
    %v2215 = vpop.f32.mrf.mxu0
    %2216 = vmatprep.mubr.f32.mxu0 %v1074
    %2217 = vmatmul.mubr.f32.gmra.mxu0 %v1073
    %v2218 = vpop.f32.mrf.mxu0
    %v2219 = vadd.f32 %v1994, %v2218
    %v2220 = vpop.f32.mrf.mxu0
    %2221 = vmatprep.mubr.f32.mxu0 %v1078
    %2222 = vmatmul.mubr.f32.gmra.mxu0 %v1077
    %v2223 = vpop.f32.mrf.mxu0
    %v2224 = vadd.f32 %v1999, %v2223
    %v2225 = vpop.f32.mrf.mxu0
    %2226 = vmatprep.mubr.f32.mxu0 %v1082
    %2227 = vmatmul.mubr.f32.gmra.mxu0 %v1081
    %v2228 = vpop.f32.mrf.mxu0
    %v2229 = vadd.f32 %v2004, %v2228
    %v2230 = vpop.f32.mrf.mxu0
    %2231 = vmatprep.mubr.f32.mxu0 %v1086
    %2232 = vmatmul.mubr.f32.gmra.mxu0 %v1085
    %v2233 = vpop.f32.mrf.mxu0
    %v2234 = vadd.f32 %v2009, %v2233
    %v2235 = vpop.f32.mrf.mxu0
    %2236 = vmatprep.mubr.f32.mxu0 %v1090
    %2237 = vmatmul.mubr.f32.gmra.mxu0 %v1089
    %v2238 = vpop.f32.mrf.mxu0
    %v2239 = vadd.f32 %v2014, %v2238
    %v2240 = vpop.f32.mrf.mxu0
    %2241 = vmatprep.mubr.f32.mxu0 %v1094
    %2242 = vmatmul.mubr.f32.gmra.mxu0 %v1093
    %v2243 = vpop.f32.mrf.mxu0
    %v2244 = vadd.f32 %v2019, %v2243
    %v2245 = vpop.f32.mrf.mxu0
    %2246 = vmatprep.mubr.f32.mxu0 %v1098
    %2247 = vmatmul.mubr.f32.gmra.mxu0 %v1097
    %v2248 = vpop.f32.mrf.mxu0
    %v2249 = vadd.f32 %v2024, %v2248
    %v2250 = vpop.f32.mrf.mxu0
    %2251 = vmatprep.mubr.f32.mxu0 %v1102
    %2252 = vmatmul.mubr.f32.gmra.mxu0 %v1101
    %v2253 = vpop.f32.mrf.mxu0
    %v2254 = vadd.f32 %v2029, %v2253
    %v2255 = vpop.f32.mrf.mxu0
    %2256 = vmatprep.mubr.f32.mxu0 %v1106
    %2257 = vmatmul.mubr.f32.gmra.mxu0 %v1105
    %v2258 = vpop.f32.mrf.mxu0
    %v2259 = vadd.f32 %v2034, %v2258
    %v2260 = vpop.f32.mrf.mxu0
    %2261 = vmatprep.mubr.f32.mxu0 %v1110
    %2262 = vmatmul.mubr.f32.gmra.mxu0 %v1109
    %v2263 = vpop.f32.mrf.mxu0
    %v2264 = vadd.f32 %v2039, %v2263
    %v2265 = vpop.f32.mrf.mxu0
    %2266 = vmatprep.mubr.f32.mxu0 %v1114
    %2267 = vmatmul.mubr.f32.gmra.mxu0 %v1113
    %v2268 = vpop.f32.mrf.mxu0
    %v2269 = vadd.f32 %v2044, %v2268
    %v2270 = vpop.f32.mrf.mxu0
    %2271 = vmatprep.mubr.f32.mxu0 %v1118
    %2272 = vmatmul.mubr.f32.gmra.mxu0 %v1117
    %v2273 = vpop.f32.mrf.mxu0
    %v2274 = vadd.f32 %v2049, %v2273
    %v2275 = vpop.f32.mrf.mxu0
    %2276 = vmatprep.mubr.f32.mxu0 %v1122
    %2277 = vmatmul.mubr.f32.gmra.mxu0 %v1121
    %v2278 = vpop.f32.mrf.mxu0
    %v2279 = vadd.f32 %v2054, %v2278
    %v2280 = vpop.f32.mrf.mxu0
    %2281 = vmatprep.mubr.f32.mxu0 %v1126
    %2282 = vmatmul.mubr.f32.gmra.mxu0 %v1125
    %v2283 = vpop.f32.mrf.mxu0
    %v2284 = vadd.f32 %v2059, %v2283
    %v2285 = vpop.f32.mrf.mxu0
    %2286 = vmatprep.mubr.f32.mxu0 %v1130
    %2287 = vmatmul.mubr.f32.gmra.mxu0 %v1129
    %v2288 = vpop.f32.mrf.mxu0
    %v2289 = vadd.f32 %v2064, %v2288
    %v2290 = vpop.f32.mrf.mxu0
    %2291 = vmatprep.mubr.f32.mxu0 %v1134
    %2292 = vmatmul.mubr.f32.gmra.mxu0 %v1133
    %v2293 = vpop.f32.mrf.mxu0
    %v2294 = vadd.f32 %v2069, %v2293
    %v2295 = vpop.f32.mrf.mxu0
    %2296 = vmatprep.mubr.f32.mxu0 %v1138
    %2297 = vmatmul.mubr.f32.gmra.mxu0 %v1137
    %v2298 = vpop.f32.mrf.mxu0
    %v2299 = vadd.f32 %v2074, %v2298
    %v2300 = vpop.f32.mrf.mxu0
    %2301 = vmatprep.mubr.f32.mxu0 %v1142
    %2302 = vmatmul.mubr.f32.gmra.mxu0 %v1141
    %v2303 = vpop.f32.mrf.mxu0
    %v2304 = vadd.f32 %v2079, %v2303
    %v2305 = vpop.f32.mrf.mxu0
    %2306 = vmatprep.mubr.f32.mxu0 %v1146
    %2307 = vmatmul.mubr.f32.gmra.mxu0 %v1145
    %v2308 = vpop.f32.mrf.mxu0
    %v2309 = vadd.f32 %v2084, %v2308
    %v2310 = vpop.f32.mrf.mxu0
    %2311 = vmatprep.mubr.f32.mxu0 %v1150
    %2312 = vmatmul.mubr.f32.gmra.mxu0 %v1149
    %v2313 = vpop.f32.mrf.mxu0
    %v2314 = vadd.f32 %v2089, %v2313
    %v2315 = vpop.f32.mrf.mxu0
    %2316 = vmatprep.mubr.f32.mxu0 %v1154
    %2317 = vmatmul.mubr.f32.gmra.mxu0 %v1153
    %v2318 = vpop.f32.mrf.mxu0
    %v2319 = vadd.f32 %v2094, %v2318
    %v2320 = vpop.f32.mrf.mxu0
    %2321 = vmatprep.mubr.f32.mxu0 %v1158
    %2322 = vmatmul.mubr.f32.gmra.mxu0 %v1157
    %v2323 = vpop.f32.mrf.mxu0
    %v2324 = vadd.f32 %v2099, %v2323
    %v2325 = vpop.f32.mrf.mxu0
    %2326 = vmatprep.mubr.f32.mxu0 %v1162
    %2327 = vmatmul.mubr.f32.gmra.mxu0 %v1161
    %v2328 = vpop.f32.mrf.mxu0
    %v2329 = vadd.f32 %v2104, %v2328
    %v2330 = vpop.f32.mrf.mxu0
    %2331 = vmatprep.mubr.f32.mxu0 %v1166
    %2332 = vmatmul.mubr.f32.gmra.mxu0 %v1165
    %v2333 = vpop.f32.mrf.mxu0
    %v2334 = vadd.f32 %v2109, %v2333
    %v2335 = vpop.f32.mrf.mxu0
    %2336 = vmatprep.mubr.f32.mxu0 %v1170
    %2337 = vmatmul.mubr.f32.gmra.mxu0 %v1169
    %v2338 = vpop.f32.mrf.mxu0
    %v2339 = vadd.f32 %v2114, %v2338
    %v2340 = vpop.f32.mrf.mxu0
    %2341 = vmatprep.mubr.f32.mxu0 %v1174
    %2342 = vmatmul.mubr.f32.gmra.mxu0 %v1173
    %v2343 = vpop.f32.mrf.mxu0
    %v2344 = vadd.f32 %v2119, %v2343
    %v2345 = vpop.f32.mrf.mxu0
    %2346 = vmatprep.mubr.f32.mxu0 %v1178
    %2347 = vmatmul.mubr.f32.gmra.mxu0 %v1177
    %v2348 = vpop.f32.mrf.mxu0
    %v2349 = vadd.f32 %v2124, %v2348
    %v2350 = vpop.f32.mrf.mxu0
    %2351 = vdwg.mxu0
    %2352 = vst [vmem:[#allocation6] sm:$0xff] %v1712
    %2353 = vst [vmem:[#allocation6 + $0x8] sm:$0xff] %v1714
    %2354 = vst [vmem:[#allocation6 + $0x10] sm:$0xff] %v2194
    %2355 = vst [vmem:[#allocation6 + $0x18] sm:$0xff] %v1718
    %2356 = vst [vmem:[#allocation6 + $0x20] sm:$0xff] %v1720
    %2357 = vst [vmem:[#allocation6 + $0x28] sm:$0xff] %v2199
    %2358 = vst [vmem:[#allocation6 + $0x30] sm:$0xff] %v1724
    %2359 = vst [vmem:[#allocation6 + $0x38] sm:$0xff] %v1726
    %2360 = vst [vmem:[#allocation6 + $0x40] sm:$0xff] %v2204
    %2361 = vst [vmem:[#allocation6 + $0x48] sm:$0xff] %v1730
    %2362 = vst [vmem:[#allocation6 + $0x50] sm:$0xff] %v1732
    %2363 = vst [vmem:[#allocation6 + $0x58] sm:$0xff] %v2209
    %2364 = vst [vmem:[#allocation6 + $0x60] sm:$0xff] %v1736
    %2365 = vst [vmem:[#allocation6 + $0x68] sm:$0xff] %v1738
    %2366 = vst [vmem:[#allocation6 + $0x70] sm:$0xff] %v2214
    %2367 = vst [vmem:[#allocation6 + $0x78] sm:$0xff] %v1742
    %2368 = vst [vmem:[#allocation6 + $0x80] sm:$0xff] %v1744
    %2369 = vst [vmem:[#allocation6 + $0x88] sm:$0xff] %v2219
    %2370 = vst [vmem:[#allocation6 + $0x90] sm:$0xff] %v1748
    %2371 = vst [vmem:[#allocation6 + $0x98] sm:$0xff] %v1750
    %2372 = vst [vmem:[#allocation6 + $0xa0] sm:$0xff] %v2224
    %2373 = vst [vmem:[#allocation6 + $0xa8] sm:$0xff] %v1754
    %2374 = vst [vmem:[#allocation6 + $0xb0] sm:$0xff] %v1756
    %2375 = vst [vmem:[#allocation6 + $0xb8] sm:$0xff] %v2229
    %2376 = vst [vmem:[#allocation6 + $0xc0] sm:$0xff] %v1760
    %2377 = vst [vmem:[#allocation6 + $0xc8] sm:$0xff] %v1762
    %2378 = vst [vmem:[#allocation6 + $0xd0] sm:$0xff] %v2234
    %2379 = vst [vmem:[#allocation6 + $0xd8] sm:$0xff] %v1766
    %2380 = vst [vmem:[#allocation6 + $0xe0] sm:$0xff] %v1768
    %2381 = vst [vmem:[#allocation6 + $0xe8] sm:$0xff] %v2239
    %2382 = vst [vmem:[#allocation6 + $0xf0] sm:$0xff] %v1772
    %2383 = vst [vmem:[#allocation6 + $0xf8] sm:$0xff] %v1774
    %2384 = vst [vmem:[#allocation6 + $0x100] sm:$0xff] %v2244
    %2385 = vst [vmem:[#allocation6 + $0x108] sm:$0xff] %v1778
    %2386 = vst [vmem:[#allocation6 + $0x110] sm:$0xff] %v1780
    %2387 = vst [vmem:[#allocation6 + $0x118] sm:$0xff] %v2249
    %2388 = vst [vmem:[#allocation6 + $0x120] sm:$0xff] %v1784
    %2389 = vst [vmem:[#allocation6 + $0x128] sm:$0xff] %v1786
    %2390 = vst [vmem:[#allocation6 + $0x130] sm:$0xff] %v2254
    %2391 = vst [vmem:[#allocation6 + $0x138] sm:$0xff] %v1790
    %2392 = vst [vmem:[#allocation6 + $0x140] sm:$0xff] %v1792
    %2393 = vst [vmem:[#allocation6 + $0x148] sm:$0xff] %v2259
    %2394 = vst [vmem:[#allocation6 + $0x150] sm:$0xff] %v1796
    %2395 = vst [vmem:[#allocation6 + $0x158] sm:$0xff] %v1798
    %2396 = vst [vmem:[#allocation6 + $0x160] sm:$0xff] %v2264
    %2397 = vst [vmem:[#allocation6 + $0x168] sm:$0xff] %v1802
    %2398 = vst [vmem:[#allocation6 + $0x170] sm:$0xff] %v1804
    %2399 = vst [vmem:[#allocation6 + $0x178] sm:$0xff] %v2269
    %2400 = vst [vmem:[#allocation6 + $0x180] sm:$0xff] %v1808
    %2401 = vst [vmem:[#allocation6 + $0x188] sm:$0xff] %v1810
    %2402 = vst [vmem:[#allocation6 + $0x190] sm:$0xff] %v2274
    %2403 = vst [vmem:[#allocation6 + $0x198] sm:$0xff] %v1814
    %2404 = vst [vmem:[#allocation6 + $0x1a0] sm:$0xff] %v1816
    %2405 = vst [vmem:[#allocation6 + $0x1a8] sm:$0xff] %v2279
    %2406 = vst [vmem:[#allocation6 + $0x1b0] sm:$0xff] %v1820
    %2407 = vst [vmem:[#allocation6 + $0x1b8] sm:$0xff] %v1822
    %2408 = vst [vmem:[#allocation6 + $0x1c0] sm:$0xff] %v2284
    %2409 = vst [vmem:[#allocation6 + $0x1c8] sm:$0xff] %v1826
    %2410 = vst [vmem:[#allocation6 + $0x1d0] sm:$0xff] %v1828
    %2411 = vst [vmem:[#allocation6 + $0x1d8] sm:$0xff] %v2289
    %2412 = vst [vmem:[#allocation6 + $0x1e0] sm:$0xff] %v1832
    %2413 = vst [vmem:[#allocation6 + $0x1e8] sm:$0xff] %v1834
    %2414 = vst [vmem:[#allocation6 + $0x1f0] sm:$0xff] %v2294
    %2415 = vst [vmem:[#allocation6 + $0x1f8] sm:$0xff] %v1838
    %2416 = vst [vmem:[#allocation6 + $0x200] sm:$0xff] %v1840
    %2417 = vst [vmem:[#allocation6 + $0x208] sm:$0xff] %v2299
    %2418 = vst [vmem:[#allocation6 + $0x210] sm:$0xff] %v1844
    %2419 = vst [vmem:[#allocation6 + $0x218] sm:$0xff] %v1846
    %2420 = vst [vmem:[#allocation6 + $0x220] sm:$0xff] %v2304
    %2421 = vst [vmem:[#allocation6 + $0x228] sm:$0xff] %v1850
    %2422 = vst [vmem:[#allocation6 + $0x230] sm:$0xff] %v1852
    %2423 = vst [vmem:[#allocation6 + $0x238] sm:$0xff] %v2309
    %2424 = vst [vmem:[#allocation6 + $0x240] sm:$0xff] %v1856
    %2425 = vst [vmem:[#allocation6 + $0x248] sm:$0xff] %v1858
    %2426 = vst [vmem:[#allocation6 + $0x250] sm:$0xff] %v2314
    %2427 = vst [vmem:[#allocation6 + $0x258] sm:$0xff] %v1862
    %2428 = vst [vmem:[#allocation6 + $0x260] sm:$0xff] %v1864
    %2429 = vst [vmem:[#allocation6 + $0x268] sm:$0xff] %v2319
    %2430 = vst [vmem:[#allocation6 + $0x270] sm:$0xff] %v1868
    %2431 = vst [vmem:[#allocation6 + $0x278] sm:$0xff] %v1870
    %2432 = vst [vmem:[#allocation6 + $0x280] sm:$0xff] %v2324
    %2433 = vst [vmem:[#allocation6 + $0x288] sm:$0xff] %v1874
    %2434 = vst [vmem:[#allocation6 + $0x290] sm:$0xff] %v1876
    %2435 = vst [vmem:[#allocation6 + $0x298] sm:$0xff] %v2329
    %2436 = vst [vmem:[#allocation6 + $0x2a0] sm:$0xff] %v1880
    %2437 = vst [vmem:[#allocation6 + $0x2a8] sm:$0xff] %v1882
    %2438 = vst [vmem:[#allocation6 + $0x2b0] sm:$0xff] %v2334
    %2439 = vst [vmem:[#allocation6 + $0x2b8] sm:$0xff] %v1886
    %2440 = vst [vmem:[#allocation6 + $0x2c0] sm:$0xff] %v1888
    %2441 = vst [vmem:[#allocation6 + $0x2c8] sm:$0xff] %v2339
    %2442 = vst [vmem:[#allocation6 + $0x2d0] sm:$0xff] %v1892
    %2443 = vst [vmem:[#allocation6 + $0x2d8] sm:$0xff] %v1894
    %2444 = vst [vmem:[#allocation6 + $0x2e0] sm:$0xff] %v2344
    %2445 = vst [vmem:[#allocation6 + $0x2e8] sm:$0xff] %v1898
    %2446 = vst [vmem:[#allocation6 + $0x2f0] sm:$0xff] %v1900
    %2447 = vst [vmem:[#allocation6 + $0x2f8] sm:$0xff] %v2349
    // Predicated region
    $region38: #{part_decoder_forward.1} parent=1 // pred_check
      _
    $region39: #{part_decoder_forward.1} parent=1 // pred_check_branch
      %2449 = sbr.rel (0) target = $region41
    $region40: #{part_decoder_forward.1} parent=1 // pred_region
      // Predicated region
      $region42: #{part_decoder_forward.1} parent=40 // pred_check
        _
      $region43: #{part_decoder_forward.1} parent=40 // pred_check_branch
        %2451 = sbr.rel (0) target = $region45
      $region44: #{part_decoder_forward.1} parent=40 // pred_region
        // Predicated region
        $region46: #{part_decoder_forward.1} parent=44 // pred_check
          _
        $region47: #{part_decoder_forward.1} parent=44 // pred_check_branch
          %2453 = sbr.rel (0) target = $region49
        $region48: #{part_decoder_forward.1} parent=44 // pred_region
          loop: start=0, step=1, limit=1
          $region50: #{part_decoder_forward.1} parent=48 // loop_pre_header
            _
          $region51: #{part_decoder_forward.1} parent=48 // loop_header
            %s2455 = sphi 0, %s2459
            %p2456 = scmp.ge.s32.totalorder %s2455, 1
            %s2460 = sphi [#allocation6], [#allocation6]
            %s2461 = sphi %s7, %s7
          $region52: #{part_decoder_forward.1} parent=48 // loop_header_branch
            %2458 = sbr.rel (%p2456) target = $region56
          $region53: #{part_decoder_forward.1} parent=48 // loop_body
            %v2462 = vld [vmem:[%s2460] sm:$0xff]
            %2463 = vst [vmem:[%s2461] sm:$0xff] %v2462
            %v2464 = vld [vmem:[%s2460 + $0x8] sm:$0xff]
            %2465 = vst [vmem:[%s2461 + $0x8] sm:$0xff] %v2464
            %v2466 = vld [vmem:[%s2460 + $0x10] sm:$0xff]
            %2467 = vst [vmem:[%s2461 + $0x10] sm:$0xff] %v2466
            %v2468 = vld [vmem:[%s2460 + $0x18] sm:$0xff]
            %2469 = vst [vmem:[%s2461 + $0x18] sm:$0xff] %v2468
            %v2470 = vld [vmem:[%s2460 + $0x20] sm:$0xff]
            %2471 = vst [vmem:[%s2461 + $0x20] sm:$0xff] %v2470
            %v2472 = vld [vmem:[%s2460 + $0x28] sm:$0xff]
            %2473 = vst [vmem:[%s2461 + $0x28] sm:$0xff] %v2472
            %v2474 = vld [vmem:[%s2460 + $0x30] sm:$0xff]
            %2475 = vst [vmem:[%s2461 + $0x30] sm:$0xff] %v2474
            %v2476 = vld [vmem:[%s2460 + $0x38] sm:$0xff]
            %2477 = vst [vmem:[%s2461 + $0x38] sm:$0xff] %v2476
            %v2478 = vld [vmem:[%s2460 + $0x40] sm:$0xff]
            %2479 = vst [vmem:[%s2461 + $0x40] sm:$0xff] %v2478
            %v2480 = vld [vmem:[%s2460 + $0x48] sm:$0xff]
            %2481 = vst [vmem:[%s2461 + $0x48] sm:$0xff] %v2480
            %v2482 = vld [vmem:[%s2460 + $0x50] sm:$0xff]
            %2483 = vst [vmem:[%s2461 + $0x50] sm:$0xff] %v2482
            %v2484 = vld [vmem:[%s2460 + $0x58] sm:$0xff]
            %2485 = vst [vmem:[%s2461 + $0x58] sm:$0xff] %v2484
            %v2486 = vld [vmem:[%s2460 + $0x60] sm:$0xff]
            %2487 = vst [vmem:[%s2461 + $0x60] sm:$0xff] %v2486
            %v2488 = vld [vmem:[%s2460 + $0x68] sm:$0xff]
            %2489 = vst [vmem:[%s2461 + $0x68] sm:$0xff] %v2488
            %v2490 = vld [vmem:[%s2460 + $0x70] sm:$0xff]
            %2491 = vst [vmem:[%s2461 + $0x70] sm:$0xff] %v2490
            %v2492 = vld [vmem:[%s2460 + $0x78] sm:$0xff]
            %2493 = vst [vmem:[%s2461 + $0x78] sm:$0xff] %v2492
            %v2494 = vld [vmem:[%s2460 + $0x80] sm:$0xff]
            %2495 = vst [vmem:[%s2461 + $0x80] sm:$0xff] %v2494
            %v2496 = vld [vmem:[%s2460 + $0x88] sm:$0xff]
            %2497 = vst [vmem:[%s2461 + $0x88] sm:$0xff] %v2496
            %v2498 = vld [vmem:[%s2460 + $0x90] sm:$0xff]
            %2499 = vst [vmem:[%s2461 + $0x90] sm:$0xff] %v2498
            %v2500 = vld [vmem:[%s2460 + $0x98] sm:$0xff]
            %2501 = vst [vmem:[%s2461 + $0x98] sm:$0xff] %v2500
            %v2502 = vld [vmem:[%s2460 + $0xa0] sm:$0xff]
            %2503 = vst [vmem:[%s2461 + $0xa0] sm:$0xff] %v2502
            %v2504 = vld [vmem:[%s2460 + $0xa8] sm:$0xff]
            %2505 = vst [vmem:[%s2461 + $0xa8] sm:$0xff] %v2504
            %v2506 = vld [vmem:[%s2460 + $0xb0] sm:$0xff]
            %2507 = vst [vmem:[%s2461 + $0xb0] sm:$0xff] %v2506
            %v2508 = vld [vmem:[%s2460 + $0xb8] sm:$0xff]
            %2509 = vst [vmem:[%s2461 + $0xb8] sm:$0xff] %v2508
            %v2510 = vld [vmem:[%s2460 + $0xc0] sm:$0xff]
            %2511 = vst [vmem:[%s2461 + $0xc0] sm:$0xff] %v2510
            %v2512 = vld [vmem:[%s2460 + $0xc8] sm:$0xff]
            %2513 = vst [vmem:[%s2461 + $0xc8] sm:$0xff] %v2512
            %v2514 = vld [vmem:[%s2460 + $0xd0] sm:$0xff]
            %2515 = vst [vmem:[%s2461 + $0xd0] sm:$0xff] %v2514
            %v2516 = vld [vmem:[%s2460 + $0xd8] sm:$0xff]
            %2517 = vst [vmem:[%s2461 + $0xd8] sm:$0xff] %v2516
            %v2518 = vld [vmem:[%s2460 + $0xe0] sm:$0xff]
            %2519 = vst [vmem:[%s2461 + $0xe0] sm:$0xff] %v2518
            %v2520 = vld [vmem:[%s2460 + $0xe8] sm:$0xff]
            %2521 = vst [vmem:[%s2461 + $0xe8] sm:$0xff] %v2520
            %v2522 = vld [vmem:[%s2460 + $0xf0] sm:$0xff]
            %2523 = vst [vmem:[%s2461 + $0xf0] sm:$0xff] %v2522
            %v2524 = vld [vmem:[%s2460 + $0xf8] sm:$0xff]
            %2525 = vst [vmem:[%s2461 + $0xf8] sm:$0xff] %v2524
            %v2526 = vld [vmem:[%s2460 + $0x100] sm:$0xff]
            %2527 = vst [vmem:[%s2461 + $0x100] sm:$0xff] %v2526
            %v2528 = vld [vmem:[%s2460 + $0x108] sm:$0xff]
            %2529 = vst [vmem:[%s2461 + $0x108] sm:$0xff] %v2528
            %v2530 = vld [vmem:[%s2460 + $0x110] sm:$0xff]
            %2531 = vst [vmem:[%s2461 + $0x110] sm:$0xff] %v2530
            %v2532 = vld [vmem:[%s2460 + $0x118] sm:$0xff]
            %2533 = vst [vmem:[%s2461 + $0x118] sm:$0xff] %v2532
            %v2534 = vld [vmem:[%s2460 + $0x120] sm:$0xff]
            %2535 = vst [vmem:[%s2461 + $0x120] sm:$0xff] %v2534
            %v2536 = vld [vmem:[%s2460 + $0x128] sm:$0xff]
            %2537 = vst [vmem:[%s2461 + $0x128] sm:$0xff] %v2536
            %v2538 = vld [vmem:[%s2460 + $0x130] sm:$0xff]
            %2539 = vst [vmem:[%s2461 + $0x130] sm:$0xff] %v2538
            %v2540 = vld [vmem:[%s2460 + $0x138] sm:$0xff]
            %2541 = vst [vmem:[%s2461 + $0x138] sm:$0xff] %v2540
            %v2542 = vld [vmem:[%s2460 + $0x140] sm:$0xff]
            %2543 = vst [vmem:[%s2461 + $0x140] sm:$0xff] %v2542
            %v2544 = vld [vmem:[%s2460 + $0x148] sm:$0xff]
            %2545 = vst [vmem:[%s2461 + $0x148] sm:$0xff] %v2544
            %v2546 = vld [vmem:[%s2460 + $0x150] sm:$0xff]
            %2547 = vst [vmem:[%s2461 + $0x150] sm:$0xff] %v2546
            %v2548 = vld [vmem:[%s2460 + $0x158] sm:$0xff]
            %2549 = vst [vmem:[%s2461 + $0x158] sm:$0xff] %v2548
            %v2550 = vld [vmem:[%s2460 + $0x160] sm:$0xff]
            %2551 = vst [vmem:[%s2461 + $0x160] sm:$0xff] %v2550
            %v2552 = vld [vmem:[%s2460 + $0x168] sm:$0xff]
            %2553 = vst [vmem:[%s2461 + $0x168] sm:$0xff] %v2552
            %v2554 = vld [vmem:[%s2460 + $0x170] sm:$0xff]
            %2555 = vst [vmem:[%s2461 + $0x170] sm:$0xff] %v2554
            %v2556 = vld [vmem:[%s2460 + $0x178] sm:$0xff]
            %2557 = vst [vmem:[%s2461 + $0x178] sm:$0xff] %v2556
            %v2558 = vld [vmem:[%s2460 + $0x180] sm:$0xff]
            %2559 = vst [vmem:[%s2461 + $0x180] sm:$0xff] %v2558
            %v2560 = vld [vmem:[%s2460 + $0x188] sm:$0xff]
            %2561 = vst [vmem:[%s2461 + $0x188] sm:$0xff] %v2560
            %v2562 = vld [vmem:[%s2460 + $0x190] sm:$0xff]
            %2563 = vst [vmem:[%s2461 + $0x190] sm:$0xff] %v2562
            %v2564 = vld [vmem:[%s2460 + $0x198] sm:$0xff]
            %2565 = vst [vmem:[%s2461 + $0x198] sm:$0xff] %v2564
            %v2566 = vld [vmem:[%s2460 + $0x1a0] sm:$0xff]
            %2567 = vst [vmem:[%s2461 + $0x1a0] sm:$0xff] %v2566
            %v2568 = vld [vmem:[%s2460 + $0x1a8] sm:$0xff]
            %2569 = vst [vmem:[%s2461 + $0x1a8] sm:$0xff] %v2568
            %v2570 = vld [vmem:[%s2460 + $0x1b0] sm:$0xff]
            %2571 = vst [vmem:[%s2461 + $0x1b0] sm:$0xff] %v2570
            %v2572 = vld [vmem:[%s2460 + $0x1b8] sm:$0xff]
            %2573 = vst [vmem:[%s2461 + $0x1b8] sm:$0xff] %v2572
            %v2574 = vld [vmem:[%s2460 + $0x1c0] sm:$0xff]
            %2575 = vst [vmem:[%s2461 + $0x1c0] sm:$0xff] %v2574
            %v2576 = vld [vmem:[%s2460 + $0x1c8] sm:$0xff]
            %2577 = vst [vmem:[%s2461 + $0x1c8] sm:$0xff] %v2576
            %v2578 = vld [vmem:[%s2460 + $0x1d0] sm:$0xff]
            %2579 = vst [vmem:[%s2461 + $0x1d0] sm:$0xff] %v2578
            %v2580 = vld [vmem:[%s2460 + $0x1d8] sm:$0xff]
            %2581 = vst [vmem:[%s2461 + $0x1d8] sm:$0xff] %v2580
            %v2582 = vld [vmem:[%s2460 + $0x1e0] sm:$0xff]
            %2583 = vst [vmem:[%s2461 + $0x1e0] sm:$0xff] %v2582
            %v2584 = vld [vmem:[%s2460 + $0x1e8] sm:$0xff]
            %2585 = vst [vmem:[%s2461 + $0x1e8] sm:$0xff] %v2584
            %v2586 = vld [vmem:[%s2460 + $0x1f0] sm:$0xff]
            %2587 = vst [vmem:[%s2461 + $0x1f0] sm:$0xff] %v2586
            %v2588 = vld [vmem:[%s2460 + $0x1f8] sm:$0xff]
            %2589 = vst [vmem:[%s2461 + $0x1f8] sm:$0xff] %v2588
            %v2590 = vld [vmem:[%s2460 + $0x200] sm:$0xff]
            %2591 = vst [vmem:[%s2461 + $0x200] sm:$0xff] %v2590
            %v2592 = vld [vmem:[%s2460 + $0x208] sm:$0xff]
            %2593 = vst [vmem:[%s2461 + $0x208] sm:$0xff] %v2592
            %v2594 = vld [vmem:[%s2460 + $0x210] sm:$0xff]
            %2595 = vst [vmem:[%s2461 + $0x210] sm:$0xff] %v2594
            %v2596 = vld [vmem:[%s2460 + $0x218] sm:$0xff]
            %2597 = vst [vmem:[%s2461 + $0x218] sm:$0xff] %v2596
            %v2598 = vld [vmem:[%s2460 + $0x220] sm:$0xff]
            %2599 = vst [vmem:[%s2461 + $0x220] sm:$0xff] %v2598
            %v2600 = vld [vmem:[%s2460 + $0x228] sm:$0xff]
            %2601 = vst [vmem:[%s2461 + $0x228] sm:$0xff] %v2600
            %v2602 = vld [vmem:[%s2460 + $0x230] sm:$0xff]
            %2603 = vst [vmem:[%s2461 + $0x230] sm:$0xff] %v2602
            %v2604 = vld [vmem:[%s2460 + $0x238] sm:$0xff]
            %2605 = vst [vmem:[%s2461 + $0x238] sm:$0xff] %v2604
            %v2606 = vld [vmem:[%s2460 + $0x240] sm:$0xff]
            %2607 = vst [vmem:[%s2461 + $0x240] sm:$0xff] %v2606
            %v2608 = vld [vmem:[%s2460 + $0x248] sm:$0xff]
            %2609 = vst [vmem:[%s2461 + $0x248] sm:$0xff] %v2608
            %v2610 = vld [vmem:[%s2460 + $0x250] sm:$0xff]
            %2611 = vst [vmem:[%s2461 + $0x250] sm:$0xff] %v2610
          $region54: #{part_decoder_forward.1} parent=48 // loop_footer
            %s2459 = sadd.s32 1, %s2455
          $region55: #{part_decoder_forward.1} parent=48 // loop_footer_branch
            %2454 = sbr.rel target = $region51
          $region56: #{part_decoder_forward.1} parent=48 // loop_exit
            _
        $region49: #{part_decoder_forward.1} parent=44 // pred_fallthru
          _
        // Predicated region
        $region57: #{part_decoder_forward.1} parent=44 // pred_check
          _
        $region58: #{part_decoder_forward.1} parent=44 // pred_check_branch
          %2613 = sbr.rel target = $region60
        $region59: #{part_decoder_forward.1} parent=44 // pred_region
          _
        $region60: #{part_decoder_forward.1} parent=44 // pred_fallthru
          _
      $region45: #{part_decoder_forward.1} parent=40 // pred_fallthru
        _
      %2614 = vnop
    $region41: #{part_decoder_forward.1} parent=1 // pred_fallthru
      _
    // Predicated region
    $region61: #{part_decoder_forward.1} parent=1 // pred_check
      _
    $region62: #{part_decoder_forward.1} parent=1 // pred_check_branch
      %2616 = sbr.rel (0) target = $region64
    $region63: #{part_decoder_forward.1} parent=1 // pred_region
      _
    $region64: #{part_decoder_forward.1} parent=1 // pred_fallthru
      _
    %2617 = vsyncpa [#allocation3], 1
    %2618 = vsyncpa [#allocation5], 1

</llo_original>
